<compile_context>
chip_gen: v7x
topology: tpu7x:2x2x1
jax: 0.10.0
libtpu: 0.0.40
codegen_flags: <defaults>
</compile_context>

<pallas_src>
import functools

import jax
import jax.numpy as jnp
from jax import lax
from jax.experimental import pallas as pl
from jax.experimental.pallas import tpu as pltpu


# Fixed encoder geometry (16x16 input is required by the Linear(64, 25) layer).
_H = 16      # input spatial size
_C_IN = 4    # input channels
_C1 = 8      # conv1 output channels
_C2 = 4      # conv2 output channels
_OH1 = 8     # conv1 output spatial size (stride 2)
_OH2 = 4     # conv2 output spatial size (stride 2)
_OW2_PAD = 8  # conv2 output width padded to 8 so all reshapes stay tile-aligned


def _fused_cnn_kernel(x_ref, w1_ref, b1_ref, w2_ref, b2_ref,
                      wenc_ref, benc_ref, wh1_ref, bh1_ref,
                      gamma_ref, beta_ref, wh2_ref, bh2_ref,
                      out_ref, xpad_ref, y1pad_ref, *, eps: float):
    f32 = jnp.float32
    B = x_ref.shape[0]

    # ---------------- conv1: pad NHWC input into VMEM scratch ----------------
    xpad_ref[...] = jnp.zeros_like(xpad_ref)
    xpad_ref[:, 1:_H + 1, 1:_H + 1, :] = x_ref[...]

    # In-kernel im2col: tap (dy, dx) is a static strided slice -> (B, 8, 8, C_IN).
    taps = []
    for dy in range(3):
        for dx in range(3):
            taps.append(xpad_ref[:, pl.ds(dy, _OH1, 2), pl.ds(dx, _OH1, 2), :])
    cols1 = jnp.concatenate(taps, axis=-1)                    # (B, 8, 8, 36)
    cols1 = cols1.reshape(B * _OH1 * _OH1, 9 * _C_IN)         # (B*64, 36)

    y1 = jnp.dot(cols1, w1_ref[...], preferred_element_type=f32) + b1_ref[...]
    y1 = jnp.maximum(y1, 0.0)                                 # (B*64, C1)

    # ------------- conv2: conv1 output into a padded VMEM scratch ------------
    y1pad_ref[...] = jnp.zeros_like(y1pad_ref)
    y1pad_ref[:, 1:_OH1 + 1, 1:_OH1 + 1, :] = y1.reshape(B, _OH1, _OH1, _C1)

    taps = []
    for dy in range(3):
        for dx in range(3):
            taps.append(
                y1pad_ref[:, pl.ds(dy, _OH2, 2), pl.ds(dx, _OW2_PAD, 2), :])
    cols2 = jnp.concatenate(taps, axis=-1)                    # (B, 4, 8, 72)
    cols2 = cols2.reshape(B * _OH2 * _OW2_PAD, 9 * _C1)       # (B*32, 72)

    y2 = jnp.dot(cols2, w2_ref[...], preferred_element_type=f32) + b2_ref[...]
    y2 = jnp.maximum(y2, 0.0)                                 # (B*32, C2)
    y2 = y2.reshape(B, _OH2 * _OW2_PAD, _C2)                  # (B, 32, 4); ox>=4 unused

    # -------- flatten (h, w, c) + encoder Linear(64 -> 25) (weights pre-permuted)
    feat = jnp.concatenate(
        [y2[:, oy * _OW2_PAD + ox, :] for oy in range(_OH2) for ox in range(_OH2)],
        axis=-1)                                              # (B, 64)
    emb = jnp.dot(feat, wenc_ref[...], preferred_element_type=f32) + benc_ref[...]

    # -------- class head: Linear -> BatchNorm1d (batch stats) -> ReLU -> Linear
    h = jnp.dot(emb, wh1_ref[...], preferred_element_type=f32) + bh1_ref[...]
    mean = jnp.mean(h, axis=0, keepdims=True)                 # single-pass E[x], E[x^2]
    var = jnp.maximum(jnp.mean(h * h, axis=0, keepdims=True) - mean * mean, 0.0)
    h = (h - mean) * lax.rsqrt(var + eps)
    h = h * gamma_ref[...] + beta_ref[...]
    h = jnp.maximum(h, 0.0)
    logits = jnp.dot(h, wh2_ref[...], preferred_element_type=f32) + bh2_ref[...]
    out_ref[...] = logits.astype(out_ref.dtype)


_VMEM = pl.BlockSpec(memory_space=pltpu.MemorySpace.VMEM)


@jax.jit
def cnn_forward(kparams, x):
    """x: (B, 4, 16, 16) NCHW float32 -> logits (B, n_types)."""
    B = x.shape[0]
    n_types = kparams["wh2"].shape[1]
    x_nhwc = jnp.transpose(x, (0, 2, 3, 1)).astype(jnp.float32)  # single tiny layout op
    args = (x_nhwc,
            kparams["w1"], kparams["b1"], kparams["w2"], kparams["b2"],
            kparams["wenc"], kparams["benc"], kparams["wh1"], kparams["bh1"],
            kparams["gamma"], kparams["beta"], kparams["wh2"], kparams["bh2"])
    # NOTE: for large batches, add a grid over B with
    # dimension_semantics=("parallel",) to shard across v7x's two TensorCores.
    return pl.pallas_call(
        functools.partial(_fused_cnn_kernel, eps=1e-5),
        out_shape=jax.ShapeDtypeStruct((B, n_types), jnp.float32),
        in_specs=[_VMEM] * len(args),
        out_specs=_VMEM,
        scratch_shapes=[
            pltpu.VMEM((B, _H + 2, _H + 2, _C_IN), jnp.float32),          # padded conv1 in
            pltpu.VMEM((B, _OH1 + 2, 2 * _OH1 + 2, _C1), jnp.float32),    # padded conv1 out
        ],
    )(*args)


# ----------------------------------------------------------------------------
# Parameters: PyTorch-layout init + one-time re-layout into kernel matrices
# ----------------------------------------------------------------------------
def init_torch_params(key, in_ch=4, n_types=6):
    """Parameters in PyTorch layout (Conv2d OIHW, Linear (out, in))."""
    ks = jax.random.split(key, 10)
    return {
        "conv1_w": jax.random.normal(ks[0], (8, in_ch, 3, 3), jnp.float32) * 0.1,
        "conv1_b": jax.random.normal(ks[1], (8,), jnp.float32) * 0.1,
        "conv2_w": jax.random.normal(ks[2], (4, 8, 3, 3), jnp.float32) * 0.1,
        "conv2_b": jax.random.normal(ks[3], (4,), jnp.float32) * 0.1,
        "enc_fc_w": jax.random.normal(ks[4], (25, 64), jnp.float32) * 0.1,
        "enc_fc_b": jax.random.normal(ks[5], (25,), jnp.float32) * 0.1,
        "fc1_w": jax.random.normal(ks[6], (64, 25), jnp.float32) * 0.1,
        "fc1_b": jax.random.normal(ks[7], (64,), jnp.float32) * 0.1,
        "bn_gamma": jnp.ones((64,), jnp.float32),
        "bn_beta": jnp.zeros((64,), jnp.float32),
        "fc2_w": jax.random.normal(ks[8], (n_types, 64), jnp.float32) * 0.1,
        "fc2_b": jax.random.normal(ks[9], (n_types,), jnp.float32) * 0.1,
    }


def prepare_params(p):
    """One-time re-layout of PyTorch-style weights into kernel-ready matrices.

    Conv weights (O, C, kh, kw) -> (kh*kw*C, O) matching the in-kernel tap/concat
    order; the encoder-FC input axis is permuted from PyTorch's (c, h, w) flatten
    to the kernel's (h, w, c) flatten; Linear weights are transposed to (in, out).
    """
    c_in = p["conv1_w"].shape[1]
    w1 = jnp.transpose(p["conv1_w"], (2, 3, 1, 0)).reshape(9 * c_in, -1)      # (36, 8)
    w2 = jnp.transpose(p["conv2_w"], (2, 3, 1, 0)).reshape(9 * _C1, -1)       # (72, 4)
    wenc = p["enc_fc_w"].reshape(25, _C2, _OH2, _OH2)                         # (out,c,h,w)
    wenc = jnp.transpose(wenc, (2, 3, 1, 0)).reshape(_C2 * _OH2 * _OH2, 25)   # (64, 25)
    return {
        "w1": w1, "b1": p["conv1_b"].reshape(1, -1),
        "w2": w2, "b2": p["conv2_b"].reshape(1, -1),
        "wenc": wenc, "benc": p["enc_fc_b"].reshape(1, -1),
        "wh1": p["fc1_w"].T, "bh1": p["fc1_b"].reshape(1, -1),
        "gamma": p["bn_gamma"].reshape(1, -1), "beta": p["bn_beta"].reshape(1, -1),
        "wh2": p["fc2_w"].T, "bh2": p["fc2_b"].reshape(1, -1),
    }


if __name__ == "__main__":
    key = jax.random.PRNGKey(0)
    pkey, xkey = jax.random.split(key)
    n_types = 6

    torch_params = init_torch_params(pkey, in_ch=4, n_types=n_types)
    kparams = prepare_params(torch_params)            # done once, outside the hot path
    x = jax.random.normal(xkey, (2, 4, 16, 16), jnp.float32)  # NCHW, like PyTorch

    logits = cnn_forward(kparams, x)
    jax.block_until_ready(logits)
    assert logits.shape == (2, n_types)
    assert bool(jnp.all(jnp.isfinite(logits)))
    print("KERNEL_OK")
</pallas_src>

<mosaic_0001>
module attributes {stable_mosaic.version = 11 : i64} {
  func.func @_fused_cnn_kernel(%arg0: memref<2x16x16x4xf32, #tpu.memory_space<vmem>>, %arg1: memref<36x8xf32, #tpu.memory_space<vmem>>, %arg2: memref<1x8xf32, #tpu.memory_space<vmem>>, %arg3: memref<72x4xf32, #tpu.memory_space<vmem>>, %arg4: memref<1x4xf32, #tpu.memory_space<vmem>>, %arg5: memref<64x25xf32, #tpu.memory_space<vmem>>, %arg6: memref<1x25xf32, #tpu.memory_space<vmem>>, %arg7: memref<25x64xf32, #tpu.memory_space<vmem>>, %arg8: memref<1x64xf32, #tpu.memory_space<vmem>>, %arg9: memref<1x64xf32, #tpu.memory_space<vmem>>, %arg10: memref<1x64xf32, #tpu.memory_space<vmem>>, %arg11: memref<64x6xf32, #tpu.memory_space<vmem>>, %arg12: memref<1x6xf32, #tpu.memory_space<vmem>>, %arg13: memref<2x6xf32, #tpu.memory_space<vmem>>, %arg14: memref<2x18x18x4xf32, #tpu.memory_space<vmem>>, %arg15: memref<2x10x18x8xf32, #tpu.memory_space<vmem>>) attributes {dimension_semantics = [], scalar_prefetch = 0 : i64, scratch_operands = 2 : i64, tpu.core_type = #tpu.core_type<tc>} {
    %cst = arith.constant 0.000000e+00 : f32
    %0 = vector.broadcast %cst : f32 to vector<2x18x18x4xf32>
    %c0 = arith.constant 0 : index
    %c0_0 = arith.constant 0 : index
    %c0_1 = arith.constant 0 : index
    %c0_2 = arith.constant 0 : index
    %1 = vector.load %arg14[%c0, %c0_0, %c0_1, %c0_2] : memref<2x18x18x4xf32, #tpu.memory_space<vmem>>, vector<2x18x18x4xf32>
    tpu.vector_store %arg14[%c0, %c0_0, %c0_1, %c0_2], %0 {strides = array<i32>} : memref<2x18x18x4xf32, #tpu.memory_space<vmem>>, vector<2x18x18x4xf32>,
    %c0_3 = arith.constant 0 : index
    %c0_4 = arith.constant 0 : index
    %c0_5 = arith.constant 0 : index
    %c0_6 = arith.constant 0 : index
    %2 = vector.load %arg0[%c0_3, %c0_4, %c0_5, %c0_6] : memref<2x16x16x4xf32, #tpu.memory_space<vmem>>, vector<2x16x16x4xf32>
    %c0_7 = arith.constant 0 : index
    %c1 = arith.constant 1 : index
    %c1_8 = arith.constant 1 : index
    %c0_9 = arith.constant 0 : index
    %3 = vector.load %arg14[%c0_7, %c1, %c1_8, %c0_9] : memref<2x18x18x4xf32, #tpu.memory_space<vmem>>, vector<2x16x16x4xf32>
    tpu.vector_store %arg14[%c0_7, %c1, %c1_8, %c0_9], %2 {strides = array<i32>} : memref<2x18x18x4xf32, #tpu.memory_space<vmem>>, vector<2x16x16x4xf32>,
    %c0_10 = arith.constant 0 : index
    %c0_11 = arith.constant 0 : index
    %c0_12 = arith.constant 0 : index
    %c0_13 = arith.constant 0 : index
    %4 = tpu.strided_load %arg14[%c0_10, %c0_11, %c0_12, %c0_13] {strides = array<i32: 1, 2, 2, 1>} : memref<2x18x18x4xf32, #tpu.memory_space<vmem>>, vector<2x8x8x4xf32>
    %c0_14 = arith.constant 0 : index
    %c0_15 = arith.constant 0 : index
    %c1_16 = arith.constant 1 : index
    %c0_17 = arith.constant 0 : index
    %5 = tpu.strided_load %arg14[%c0_14, %c0_15, %c1_16, %c0_17] {strides = array<i32: 1, 2, 2, 1>} : memref<2x18x18x4xf32, #tpu.memory_space<vmem>>, vector<2x8x8x4xf32>
    %c0_18 = arith.constant 0 : index
    %c0_19 = arith.constant 0 : index
    %c2 = arith.constant 2 : index
    %c0_20 = arith.constant 0 : index
    %6 = tpu.strided_load %arg14[%c0_18, %c0_19, %c2, %c0_20] {strides = array<i32: 1, 2, 2, 1>} : memref<2x18x18x4xf32, #tpu.memory_space<vmem>>, vector<2x8x8x4xf32>
    %c0_21 = arith.constant 0 : index
    %c1_22 = arith.constant 1 : index
    %c0_23 = arith.constant 0 : index
    %c0_24 = arith.constant 0 : index
    %7 = tpu.strided_load %arg14[%c0_21, %c1_22, %c0_23, %c0_24] {strides = array<i32: 1, 2, 2, 1>} : memref<2x18x18x4xf32, #tpu.memory_space<vmem>>, vector<2x8x8x4xf32>
    %c0_25 = arith.constant 0 : index
    %c1_26 = arith.constant 1 : index
    %c1_27 = arith.constant 1 : index
    %c0_28 = arith.constant 0 : index
    %8 = tpu.strided_load %arg14[%c0_25, %c1_26, %c1_27, %c0_28] {strides = array<i32: 1, 2, 2, 1>} : memref<2x18x18x4xf32, #tpu.memory_space<vmem>>, vector<2x8x8x4xf32>
    %c0_29 = arith.constant 0 : index
    %c1_30 = arith.constant 1 : index
    %c2_31 = arith.constant 2 : index
    %c0_32 = arith.constant 0 : index
    %9 = tpu.strided_load %arg14[%c0_29, %c1_30, %c2_31, %c0_32] {strides = array<i32: 1, 2, 2, 1>} : memref<2x18x18x4xf32, #tpu.memory_space<vmem>>, vector<2x8x8x4xf32>
    %c0_33 = arith.constant 0 : index
    %c2_34 = arith.constant 2 : index
    %c0_35 = arith.constant 0 : index
    %c0_36 = arith.constant 0 : index
    %10 = tpu.strided_load %arg14[%c0_33, %c2_34, %c0_35, %c0_36] {strides = array<i32: 1, 2, 2, 1>} : memref<2x18x18x4xf32, #tpu.memory_space<vmem>>, vector<2x8x8x4xf32>
    %c0_37 = arith.constant 0 : index
    %c2_38 = arith.constant 2 : index
    %c1_39 = arith.constant 1 : index
    %c0_40 = arith.constant 0 : index
    %11 = tpu.strided_load %arg14[%c0_37, %c2_38, %c1_39, %c0_40] {strides = array<i32: 1, 2, 2, 1>} : memref<2x18x18x4xf32, #tpu.memory_space<vmem>>, vector<2x8x8x4xf32>
    %c0_41 = arith.constant 0 : index
    %c2_42 = arith.constant 2 : index
    %c2_43 = arith.constant 2 : index
    %c0_44 = arith.constant 0 : index
    %12 = tpu.strided_load %arg14[%c0_41, %c2_42, %c2_43, %c0_44] {strides = array<i32: 1, 2, 2, 1>} : memref<2x18x18x4xf32, #tpu.memory_space<vmem>>, vector<2x8x8x4xf32>
    %13 = tpu.concatenate %4, %5, %6, %7, %8, %9, %10, %11, %12 in 3 : vector<2x8x8x4xf32>, vector<2x8x8x4xf32>, vector<2x8x8x4xf32>, vector<2x8x8x4xf32>, vector<2x8x8x4xf32>, vector<2x8x8x4xf32>, vector<2x8x8x4xf32>, vector<2x8x8x4xf32>, vector<2x8x8x4xf32> -> vector<2x8x8x36xf32>
    %14 = vector.shape_cast %13 : vector<2x8x8x36xf32> to vector<128x36xf32>
    %c0_45 = arith.constant 0 : index
    %c0_46 = arith.constant 0 : index
    %15 = vector.load %arg1[%c0_45, %c0_46] : memref<36x8xf32, #tpu.memory_space<vmem>>, vector<36x8xf32>
    %cst_47 = arith.constant dense<0.000000e+00> : vector<128x8xf32>
    %16 = tpu.matmul %14, %15, %cst_47 {dimension_numbers = #tpu.dot_dimension_numbers<[1], [0], [0], [1], [0, 0, 1, 1], [], []>} : vector<128x36xf32>, vector<36x8xf32>, vector<128x8xf32> -> vector<128x8xf32>
    %c0_48 = arith.constant 0 : index
    %c0_49 = arith.constant 0 : index
    %17 = vector.load %arg2[%c0_48, %c0_49] : memref<1x8xf32, #tpu.memory_space<vmem>>, vector<1x8xf32>
    %18 = vector.broadcast %17 : vector<1x8xf32> to vector<128x8xf32>
    %19 = arith.addf %16, %18 : vector<128x8xf32>
    %cst_50 = arith.constant 0.000000e+00 : f32
    %20 = vector.broadcast %cst_50 : f32 to vector<128x8xf32>
    %21 = arith.maximumf %19, %20 : vector<128x8xf32>
    %cst_51 = arith.constant 0.000000e+00 : f32
    %22 = vector.broadcast %cst_51 : f32 to vector<2x10x18x8xf32>
    %c0_52 = arith.constant 0 : index
    %c0_53 = arith.constant 0 : index
    %c0_54 = arith.constant 0 : index
    %c0_55 = arith.constant 0 : index
    %23 = vector.load %arg15[%c0_52, %c0_53, %c0_54, %c0_55] : memref<2x10x18x8xf32, #tpu.memory_space<vmem>>, vector<2x10x18x8xf32>
    tpu.vector_store %arg15[%c0_52, %c0_53, %c0_54, %c0_55], %22 {strides = array<i32>} : memref<2x10x18x8xf32, #tpu.memory_space<vmem>>, vector<2x10x18x8xf32>,
    %24 = vector.shape_cast %21 : vector<128x8xf32> to vector<2x8x8x8xf32>
    %c0_56 = arith.constant 0 : index
    %c1_57 = arith.constant 1 : index
    %c1_58 = arith.constant 1 : index
    %c0_59 = arith.constant 0 : index
    %25 = vector.load %arg15[%c0_56, %c1_57, %c1_58, %c0_59] : memref<2x10x18x8xf32, #tpu.memory_space<vmem>>, vector<2x8x8x8xf32>
    tpu.vector_store %arg15[%c0_56, %c1_57, %c1_58, %c0_59], %24 {strides = array<i32>} : memref<2x10x18x8xf32, #tpu.memory_space<vmem>>, vector<2x8x8x8xf32>,
    %c0_60 = arith.constant 0 : index
    %c0_61 = arith.constant 0 : index
    %c0_62 = arith.constant 0 : index
    %c0_63 = arith.constant 0 : index
    %26 = tpu.strided_load %arg15[%c0_60, %c0_61, %c0_62, %c0_63] {strides = array<i32: 1, 2, 2, 1>} : memref<2x10x18x8xf32, #tpu.memory_space<vmem>>, vector<2x4x8x8xf32>
    %c0_64 = arith.constant 0 : index
    %c0_65 = arith.constant 0 : index
    %c1_66 = arith.constant 1 : index
    %c0_67 = arith.constant 0 : index
    %27 = tpu.strided_load %arg15[%c0_64, %c0_65, %c1_66, %c0_67] {strides = array<i32: 1, 2, 2, 1>} : memref<2x10x18x8xf32, #tpu.memory_space<vmem>>, vector<2x4x8x8xf32>
    %c0_68 = arith.constant 0 : index
    %c0_69 = arith.constant 0 : index
    %c2_70 = arith.constant 2 : index
    %c0_71 = arith.constant 0 : index
    %28 = tpu.strided_load %arg15[%c0_68, %c0_69, %c2_70, %c0_71] {strides = array<i32: 1, 2, 2, 1>} : memref<2x10x18x8xf32, #tpu.memory_space<vmem>>, vector<2x4x8x8xf32>
    %c0_72 = arith.constant 0 : index
    %c1_73 = arith.constant 1 : index
    %c0_74 = arith.constant 0 : index
    %c0_75 = arith.constant 0 : index
    %29 = tpu.strided_load %arg15[%c0_72, %c1_73, %c0_74, %c0_75] {strides = array<i32: 1, 2, 2, 1>} : memref<2x10x18x8xf32, #tpu.memory_space<vmem>>, vector<2x4x8x8xf32>
    %c0_76 = arith.constant 0 : index
    %c1_77 = arith.constant 1 : index
    %c1_78 = arith.constant 1 : index
    %c0_79 = arith.constant 0 : index
    %30 = tpu.strided_load %arg15[%c0_76, %c1_77, %c1_78, %c0_79] {strides = array<i32: 1, 2, 2, 1>} : memref<2x10x18x8xf32, #tpu.memory_space<vmem>>, vector<2x4x8x8xf32>
    %c0_80 = arith.constant 0 : index
    %c1_81 = arith.constant 1 : index
    %c2_82 = arith.constant 2 : index
    %c0_83 = arith.constant 0 : index
    %31 = tpu.strided_load %arg15[%c0_80, %c1_81, %c2_82, %c0_83] {strides = array<i32: 1, 2, 2, 1>} : memref<2x10x18x8xf32, #tpu.memory_space<vmem>>, vector<2x4x8x8xf32>
    %c0_84 = arith.constant 0 : index
    %c2_85 = arith.constant 2 : index
    %c0_86 = arith.constant 0 : index
    %c0_87 = arith.constant 0 : index
    %32 = tpu.strided_load %arg15[%c0_84, %c2_85, %c0_86, %c0_87] {strides = array<i32: 1, 2, 2, 1>} : memref<2x10x18x8xf32, #tpu.memory_space<vmem>>, vector<2x4x8x8xf32>
    %c0_88 = arith.constant 0 : index
    %c2_89 = arith.constant 2 : index
    %c1_90 = arith.constant 1 : index
    %c0_91 = arith.constant 0 : index
    %33 = tpu.strided_load %arg15[%c0_88, %c2_89, %c1_90, %c0_91] {strides = array<i32: 1, 2, 2, 1>} : memref<2x10x18x8xf32, #tpu.memory_space<vmem>>, vector<2x4x8x8xf32>
    %c0_92 = arith.constant 0 : index
    %c2_93 = arith.constant 2 : index
    %c2_94 = arith.constant 2 : index
    %c0_95 = arith.constant 0 : index
    %34 = tpu.strided_load %arg15[%c0_92, %c2_93, %c2_94, %c0_95] {strides = array<i32: 1, 2, 2, 1>} : memref<2x10x18x8xf32, #tpu.memory_space<vmem>>, vector<2x4x8x8xf32>
    %35 = tpu.concatenate %26, %27, %28, %29, %30, %31, %32, %33, %34 in 3 : vector<2x4x8x8xf32>, vector<2x4x8x8xf32>, vector<2x4x8x8xf32>, vector<2x4x8x8xf32>, vector<2x4x8x8xf32>, vector<2x4x8x8xf32>, vector<2x4x8x8xf32>, vector<2x4x8x8xf32>, vector<2x4x8x8xf32> -> vector<2x4x8x72xf32>
    %36 = vector.shape_cast %35 : vector<2x4x8x72xf32> to vector<64x72xf32>
    %c0_96 = arith.constant 0 : index
    %c0_97 = arith.constant 0 : index
    %37 = vector.load %arg3[%c0_96, %c0_97] : memref<72x4xf32, #tpu.memory_space<vmem>>, vector<72x4xf32>
    %cst_98 = arith.constant dense<0.000000e+00> : vector<64x4xf32>
    %38 = tpu.matmul %36, %37, %cst_98 {dimension_numbers = #tpu.dot_dimension_numbers<[1], [0], [0], [1], [0, 0, 1, 1], [], []>} : vector<64x72xf32>, vector<72x4xf32>, vector<64x4xf32> -> vector<64x4xf32>
    %c0_99 = arith.constant 0 : index
    %c0_100 = arith.constant 0 : index
    %39 = vector.load %arg4[%c0_99, %c0_100] : memref<1x4xf32, #tpu.memory_space<vmem>>, vector<1x4xf32>
    %40 = vector.broadcast %39 : vector<1x4xf32> to vector<64x4xf32>
    %41 = arith.addf %38, %40 : vector<64x4xf32>
    %cst_101 = arith.constant 0.000000e+00 : f32
    %42 = vector.broadcast %cst_101 : f32 to vector<64x4xf32>
    %43 = arith.maximumf %41, %42 : vector<64x4xf32>
    %44 = vector.shape_cast %43 : vector<64x4xf32> to vector<2x32x4xf32>
    %45 = vector.extract_strided_slice %44 {offsets = [0, 0, 0], sizes = [2, 1, 4], strides = [1, 1, 1]} : vector<2x32x4xf32> to vector<2x1x4xf32>
    %46 = vector.shape_cast %45 : vector<2x1x4xf32> to vector<2x4xf32>
    %47 = vector.extract_strided_slice %44 {offsets = [0, 1, 0], sizes = [2, 1, 4], strides = [1, 1, 1]} : vector<2x32x4xf32> to vector<2x1x4xf32>
    %48 = vector.shape_cast %47 : vector<2x1x4xf32> to vector<2x4xf32>
    %49 = vector.extract_strided_slice %44 {offsets = [0, 2, 0], sizes = [2, 1, 4], strides = [1, 1, 1]} : vector<2x32x4xf32> to vector<2x1x4xf32>
    %50 = vector.shape_cast %49 : vector<2x1x4xf32> to vector<2x4xf32>
    %51 = vector.extract_strided_slice %44 {offsets = [0, 3, 0], sizes = [2, 1, 4], strides = [1, 1, 1]} : vector<2x32x4xf32> to vector<2x1x4xf32>
    %52 = vector.shape_cast %51 : vector<2x1x4xf32> to vector<2x4xf32>
    %53 = vector.extract_strided_slice %44 {offsets = [0, 8, 0], sizes = [2, 1, 4], strides = [1, 1, 1]} : vector<2x32x4xf32> to vector<2x1x4xf32>
    %54 = vector.shape_cast %53 : vector<2x1x4xf32> to vector<2x4xf32>
    %55 = vector.extract_strided_slice %44 {offsets = [0, 9, 0], sizes = [2, 1, 4], strides = [1, 1, 1]} : vector<2x32x4xf32> to vector<2x1x4xf32>
    %56 = vector.shape_cast %55 : vector<2x1x4xf32> to vector<2x4xf32>
    %57 = vector.extract_strided_slice %44 {offsets = [0, 10, 0], sizes = [2, 1, 4], strides = [1, 1, 1]} : vector<2x32x4xf32> to vector<2x1x4xf32>
    %58 = vector.shape_cast %57 : vector<2x1x4xf32> to vector<2x4xf32>
    %59 = vector.extract_strided_slice %44 {offsets = [0, 11, 0], sizes = [2, 1, 4], strides = [1, 1, 1]} : vector<2x32x4xf32> to vector<2x1x4xf32>
    %60 = vector.shape_cast %59 : vector<2x1x4xf32> to vector<2x4xf32>
    %61 = vector.extract_strided_slice %44 {offsets = [0, 16, 0], sizes = [2, 1, 4], strides = [1, 1, 1]} : vector<2x32x4xf32> to vector<2x1x4xf32>
    %62 = vector.shape_cast %61 : vector<2x1x4xf32> to vector<2x4xf32>
    %63 = vector.extract_strided_slice %44 {offsets = [0, 17, 0], sizes = [2, 1, 4], strides = [1, 1, 1]} : vector<2x32x4xf32> to vector<2x1x4xf32>
    %64 = vector.shape_cast %63 : vector<2x1x4xf32> to vector<2x4xf32>
    %65 = vector.extract_strided_slice %44 {offsets = [0, 18, 0], sizes = [2, 1, 4], strides = [1, 1, 1]} : vector<2x32x4xf32> to vector<2x1x4xf32>
    %66 = vector.shape_cast %65 : vector<2x1x4xf32> to vector<2x4xf32>
    %67 = vector.extract_strided_slice %44 {offsets = [0, 19, 0], sizes = [2, 1, 4], strides = [1, 1, 1]} : vector<2x32x4xf32> to vector<2x1x4xf32>
    %68 = vector.shape_cast %67 : vector<2x1x4xf32> to vector<2x4xf32>
    %69 = vector.extract_strided_slice %44 {offsets = [0, 24, 0], sizes = [2, 1, 4], strides = [1, 1, 1]} : vector<2x32x4xf32> to vector<2x1x4xf32>
    %70 = vector.shape_cast %69 : vector<2x1x4xf32> to vector<2x4xf32>
    %71 = vector.extract_strided_slice %44 {offsets = [0, 25, 0], sizes = [2, 1, 4], strides = [1, 1, 1]} : vector<2x32x4xf32> to vector<2x1x4xf32>
    %72 = vector.shape_cast %71 : vector<2x1x4xf32> to vector<2x4xf32>
    %73 = vector.extract_strided_slice %44 {offsets = [0, 26, 0], sizes = [2, 1, 4], strides = [1, 1, 1]} : vector<2x32x4xf32> to vector<2x1x4xf32>
    %74 = vector.shape_cast %73 : vector<2x1x4xf32> to vector<2x4xf32>
    %75 = vector.extract_strided_slice %44 {offsets = [0, 27, 0], sizes = [2, 1, 4], strides = [1, 1, 1]} : vector<2x32x4xf32> to vector<2x1x4xf32>
    %76 = vector.shape_cast %75 : vector<2x1x4xf32> to vector<2x4xf32>
    %77 = tpu.concatenate %46, %48, %50, %52, %54, %56, %58, %60, %62, %64, %66, %68, %70, %72, %74, %76 in 1 : vector<2x4xf32>, vector<2x4xf32>, vector<2x4xf32>, vector<2x4xf32>, vector<2x4xf32>, vector<2x4xf32>, vector<2x4xf32>, vector<2x4xf32>, vector<2x4xf32>, vector<2x4xf32>, vector<2x4xf32>, vector<2x4xf32>, vector<2x4xf32>, vector<2x4xf32>, vector<2x4xf32>, vector<2x4xf32> -> vector<2x64xf32>
    %c0_102 = arith.constant 0 : index
    %c0_103 = arith.constant 0 : index
    %78 = vector.load %arg5[%c0_102, %c0_103] : memref<64x25xf32, #tpu.memory_space<vmem>>, vector<64x25xf32>
    %cst_104 = arith.constant dense<0.000000e+00> : vector<2x25xf32>
    %79 = tpu.matmul %77, %78, %cst_104 {dimension_numbers = #tpu.dot_dimension_numbers<[1], [0], [0], [1], [0, 0, 1, 1], [], []>} : vector<2x64xf32>, vector<64x25xf32>, vector<2x25xf32> -> vector<2x25xf32>
    %c0_105 = arith.constant 0 : index
    %c0_106 = arith.constant 0 : index
    %80 = vector.load %arg6[%c0_105, %c0_106] : memref<1x25xf32, #tpu.memory_space<vmem>>, vector<1x25xf32>
    %81 = vector.broadcast %80 : vector<1x25xf32> to vector<2x25xf32>
    %82 = arith.addf %79, %81 : vector<2x25xf32>
    %c0_107 = arith.constant 0 : index
    %c0_108 = arith.constant 0 : index
    %83 = vector.load %arg7[%c0_107, %c0_108] : memref<25x64xf32, #tpu.memory_space<vmem>>, vector<25x64xf32>
    %cst_109 = arith.constant dense<0.000000e+00> : vector<2x64xf32>
    %84 = tpu.matmul %82, %83, %cst_109 {dimension_numbers = #tpu.dot_dimension_numbers<[1], [0], [0], [1], [0, 0, 1, 1], [], []>} : vector<2x25xf32>, vector<25x64xf32>, vector<2x64xf32> -> vector<2x64xf32>
    %c0_110 = arith.constant 0 : index
    %c0_111 = arith.constant 0 : index
    %85 = vector.load %arg8[%c0_110, %c0_111] : memref<1x64xf32, #tpu.memory_space<vmem>>, vector<1x64xf32>
    %86 = vector.broadcast %85 : vector<1x64xf32> to vector<2x64xf32>
    %87 = arith.addf %84, %86 : vector<2x64xf32>
    %cst_112 = arith.constant dense<0.000000e+00> : vector<64xf32>
    %88 = vector.multi_reduction <add>, %87, %cst_112 [0] : vector<2x64xf32> to vector<64xf32>
    %89 = vector.shape_cast %88 : vector<64xf32> to vector<1x64xf32>
    %cst_113 = arith.constant 2.000000e+00 : f32
    %90 = vector.broadcast %cst_113 : f32 to vector<1x64xf32>
    %91 = arith.divf %89, %90 : vector<1x64xf32>
    %92 = arith.mulf %87, %87 : vector<2x64xf32>
    %cst_114 = arith.constant dense<0.000000e+00> : vector<64xf32>
    %93 = vector.multi_reduction <add>, %92, %cst_114 [0] : vector<2x64xf32> to vector<64xf32>
    %94 = vector.shape_cast %93 : vector<64xf32> to vector<1x64xf32>
    %cst_115 = arith.constant 2.000000e+00 : f32
    %95 = vector.broadcast %cst_115 : f32 to vector<1x64xf32>
    %96 = arith.divf %94, %95 : vector<1x64xf32>
    %97 = arith.mulf %91, %91 : vector<1x64xf32>
    %98 = arith.subf %96, %97 : vector<1x64xf32>
    %cst_116 = arith.constant 0.000000e+00 : f32
    %99 = vector.broadcast %cst_116 : f32 to vector<1x64xf32>
    %100 = arith.maximumf %98, %99 : vector<1x64xf32>
    %101 = vector.broadcast %91 : vector<1x64xf32> to vector<2x64xf32>
    %102 = arith.subf %87, %101 : vector<2x64xf32>
    %cst_117 = arith.constant 9.99999974E-6 : f32
    %103 = vector.broadcast %cst_117 : f32 to vector<1x64xf32>
    %104 = arith.addf %100, %103 : vector<1x64xf32>
    %105 = math.rsqrt %104 : vector<1x64xf32>
    %106 = vector.broadcast %105 : vector<1x64xf32> to vector<2x64xf32>
    %107 = arith.mulf %102, %106 : vector<2x64xf32>
    %c0_118 = arith.constant 0 : index
    %c0_119 = arith.constant 0 : index
    %108 = vector.load %arg9[%c0_118, %c0_119] : memref<1x64xf32, #tpu.memory_space<vmem>>, vector<1x64xf32>
    %109 = vector.broadcast %108 : vector<1x64xf32> to vector<2x64xf32>
    %110 = arith.mulf %107, %109 : vector<2x64xf32>
    %c0_120 = arith.constant 0 : index
    %c0_121 = arith.constant 0 : index
    %111 = vector.load %arg10[%c0_120, %c0_121] : memref<1x64xf32, #tpu.memory_space<vmem>>, vector<1x64xf32>
    %112 = vector.broadcast %111 : vector<1x64xf32> to vector<2x64xf32>
    %113 = arith.addf %110, %112 : vector<2x64xf32>
    %cst_122 = arith.constant 0.000000e+00 : f32
    %114 = vector.broadcast %cst_122 : f32 to vector<2x64xf32>
    %115 = arith.maximumf %113, %114 : vector<2x64xf32>
    %c0_123 = arith.constant 0 : index
    %c0_124 = arith.constant 0 : index
    %116 = vector.load %arg11[%c0_123, %c0_124] : memref<64x6xf32, #tpu.memory_space<vmem>>, vector<64x6xf32>
    %cst_125 = arith.constant dense<0.000000e+00> : vector<2x6xf32>
    %117 = tpu.matmul %115, %116, %cst_125 {dimension_numbers = #tpu.dot_dimension_numbers<[1], [0], [0], [1], [0, 0, 1, 1], [], []>} : vector<2x64xf32>, vector<64x6xf32>, vector<2x6xf32> -> vector<2x6xf32>
    %c0_126 = arith.constant 0 : index
    %c0_127 = arith.constant 0 : index
    %118 = vector.load %arg12[%c0_126, %c0_127] : memref<1x6xf32, #tpu.memory_space<vmem>>, vector<1x6xf32>
    %119 = vector.broadcast %118 : vector<1x6xf32> to vector<2x6xf32>
    %120 = arith.addf %117, %119 : vector<2x6xf32>
    %c0_128 = arith.constant 0 : index
    %c0_129 = arith.constant 0 : index
    %121 = vector.load %arg13[%c0_128, %c0_129] : memref<2x6xf32, #tpu.memory_space<vmem>>, vector<2x6xf32>
    tpu.vector_store %arg13[%c0_128, %c0_129], %120 {strides = array<i32>} : memref<2x6xf32, #tpu.memory_space<vmem>>, vector<2x6xf32>,
    return
  }
}

</mosaic_0001>

<llo_original>
// kernel: cnn_forward.1
$region0: #{cnn_forward.1}
  #allocation0 [shape = 'u32[]', space=smem, size = 0x4, offset = 0x4, fixed_abs, tag = 'smem constant byte address 0x4 - core index']
  #allocation1 [shape = 'u32[144,128]{1,0:T(1,128)}', space=vmem, size = 0x12000, scoped, tag = 'internal scratch']
  #allocation2 [shape = 'f32[2,18,18,4]{3,2,1,0:T(8,128)}', space=vmem, size = 0x6c000, scoped, tag = 'scratch operand']
  #allocation3 [shape = 'f32[2,10,18,8]{3,2,1,0:T(8,128)}', space=vmem, size = 0x3c000, scoped, tag = 'scratch operand']
  %s0 = inlined_call_operand.vmem [shape: f32[2,16,16,4], index: 0, kind: input, shape index: {}]
  %s1 = inlined_call_operand.vmem [shape: f32[36,8], index: 1, kind: input, shape index: {}]
  %s2 = inlined_call_operand.vmem [shape: f32[1,8], index: 2, kind: input, shape index: {}]
  %s3 = inlined_call_operand.vmem [shape: f32[72,4], index: 3, kind: input, shape index: {}]
  %s4 = inlined_call_operand.vmem [shape: f32[1,4], index: 4, kind: input, shape index: {}]
  %s5 = inlined_call_operand.vmem [shape: f32[64,25], index: 5, kind: input, shape index: {}]
  %s6 = inlined_call_operand.vmem [shape: f32[1,25], index: 6, kind: input, shape index: {}]
  %s7 = inlined_call_operand.vmem [shape: f32[25,64], index: 7, kind: input, shape index: {}]
  %s8 = inlined_call_operand.vmem [shape: f32[1,64], index: 8, kind: input, shape index: {}]
  %s9 = inlined_call_operand.vmem [shape: f32[1,64], index: 9, kind: input, shape index: {}]
  %s10 = inlined_call_operand.vmem [shape: f32[1,64], index: 10, kind: input, shape index: {}]
  %s11 = inlined_call_operand.vmem [shape: f32[64,6], index: 11, kind: input, shape index: {}]
  %s12 = inlined_call_operand.vmem [shape: f32[1,6], index: 12, kind: input, shape index: {}]
  %s13 = inlined_call_operand.hbm [shape: f32[2,6], index: 13, kind: output, shape index: {}]
  %s14 = sld [smem:[#allocation0]]
  $region62: #{cnn_forward.1} parent=0
    _
  %s16 = ssub.s32 1, %s14
  %s17 = scalar_select 0, %s16, %s14
  $region1: #{cnn_forward.1} parent=0
    #allocation4 [shape = 'u8[1024]{0}', space=vmem, size = 0x400, scoped, tag = 'output window, operand 0, single buffered']
    #allocation5 [shape = 's32[1]{0}', space=sflag, size = 0x4, scoped, tag = 'scoped memory for cnn_forward.1']
    %18 = vsyncpa [#allocation5], 0
    // Predicated region
    $region2: #{cnn_forward.1} parent=1 // pred_check
      _
    $region3: #{cnn_forward.1} parent=1 // pred_check_branch
      %20 = sbr.rel (0) target = $region5
    $region4: #{cnn_forward.1} parent=1 // pred_region
      _
    $region5: #{cnn_forward.1} parent=1 // pred_fallthru
      _
    // Predicated region
    $region6: #{cnn_forward.1} parent=1 // pred_check
      _
    $region7: #{cnn_forward.1} parent=1 // pred_check_branch
      %22 = sbr.rel (0) target = $region9
    $region8: #{cnn_forward.1} parent=1 // pred_region
      _
    $region9: #{cnn_forward.1} parent=1 // pred_fallthru
      _
    // Predicated region
    $region10: #{cnn_forward.1} parent=1 // pred_check
      _
    $region11: #{cnn_forward.1} parent=1 // pred_check_branch
      %24 = sbr.rel (0) target = $region13
    $region12: #{cnn_forward.1} parent=1 // pred_region
      _
    $region13: #{cnn_forward.1} parent=1 // pred_fallthru
      _
    // Predicated region
    $region14: #{cnn_forward.1} parent=1 // pred_check
      _
    $region15: #{cnn_forward.1} parent=1 // pred_check_branch
      %26 = sbr.rel (0) target = $region17
    $region16: #{cnn_forward.1} parent=1 // pred_region
      _
    $region17: #{cnn_forward.1} parent=1 // pred_fallthru
      _
    // Predicated region
    $region18: #{cnn_forward.1} parent=1 // pred_check
      _
    $region19: #{cnn_forward.1} parent=1 // pred_check_branch
      %28 = sbr.rel (0) target = $region21
    $region20: #{cnn_forward.1} parent=1 // pred_region
      _
    $region21: #{cnn_forward.1} parent=1 // pred_fallthru
      _
    // Predicated region
    $region22: #{cnn_forward.1} parent=1 // pred_check
      _
    $region23: #{cnn_forward.1} parent=1 // pred_check_branch
      %30 = sbr.rel (0) target = $region25
    $region24: #{cnn_forward.1} parent=1 // pred_region
      _
    $region25: #{cnn_forward.1} parent=1 // pred_fallthru
      _
    // Predicated region
    $region26: #{cnn_forward.1} parent=1 // pred_check
      _
    $region27: #{cnn_forward.1} parent=1 // pred_check_branch
      %32 = sbr.rel (0) target = $region29
    $region28: #{cnn_forward.1} parent=1 // pred_region
      _
    $region29: #{cnn_forward.1} parent=1 // pred_fallthru
      _
    // Predicated region
    $region30: #{cnn_forward.1} parent=1 // pred_check
      _
    $region31: #{cnn_forward.1} parent=1 // pred_check_branch
      %34 = sbr.rel (0) target = $region33
    $region32: #{cnn_forward.1} parent=1 // pred_region
      _
    $region33: #{cnn_forward.1} parent=1 // pred_fallthru
      _
    // Predicated region
    $region34: #{cnn_forward.1} parent=1 // pred_check
      _
    $region35: #{cnn_forward.1} parent=1 // pred_check_branch
      %36 = sbr.rel (0) target = $region37
    $region36: #{cnn_forward.1} parent=1 // pred_region
      _
    $region37: #{cnn_forward.1} parent=1 // pred_fallthru
      _
    // Predicated region
    $region38: #{cnn_forward.1} parent=1 // pred_check
      _
    $region39: #{cnn_forward.1} parent=1 // pred_check_branch
      %38 = sbr.rel (0) target = $region41
    $region40: #{cnn_forward.1} parent=1 // pred_region
      _
    $region41: #{cnn_forward.1} parent=1 // pred_fallthru
      _
    // Predicated region
    $region42: #{cnn_forward.1} parent=1 // pred_check
      _
    $region43: #{cnn_forward.1} parent=1 // pred_check_branch
      %40 = sbr.rel (0) target = $region45
    $region44: #{cnn_forward.1} parent=1 // pred_region
      _
    $region45: #{cnn_forward.1} parent=1 // pred_fallthru
      _
    // Predicated region
    $region46: #{cnn_forward.1} parent=1 // pred_check
      _
    $region47: #{cnn_forward.1} parent=1 // pred_check_branch
      %42 = sbr.rel (0) target = $region49
    $region48: #{cnn_forward.1} parent=1 // pred_region
      _
    $region49: #{cnn_forward.1} parent=1 // pred_fallthru
      _
    // Predicated region
    $region50: #{cnn_forward.1} parent=1 // pred_check
      _
    $region51: #{cnn_forward.1} parent=1 // pred_check_branch
      %44 = sbr.rel (0) target = $region53
    $region52: #{cnn_forward.1} parent=1 // pred_region
      _
    $region53: #{cnn_forward.1} parent=1 // pred_fallthru
      _
    %vm45 = vcmask 31744
    %46 = vst.msk [vmem:[#allocation2] sm:$0xff] %vm45, 0.0
    %47 = vst.msk [vmem:[#allocation2 + $0x8] sm:$0xff] %vm45, 0.0
    %vm48 = vcmask 25600
    %49 = vst.msk [vmem:[#allocation2 + $0x10] sm:$0x3] %vm48, 0.0
    %50 = vst.msk [vmem:[#allocation2 + $0x18] sm:$0xff] %vm45, 0.0
    %51 = vst.msk [vmem:[#allocation2 + $0x20] sm:$0xff] %vm45, 0.0
    %52 = vst.msk [vmem:[#allocation2 + $0x28] sm:$0x3] %vm48, 0.0
    %53 = vst.msk [vmem:[#allocation2 + $0x30] sm:$0xff] %vm45, 0.0
    %54 = vst.msk [vmem:[#allocation2 + $0x38] sm:$0xff] %vm45, 0.0
    %55 = vst.msk [vmem:[#allocation2 + $0x40] sm:$0x3] %vm48, 0.0
    %56 = vst.msk [vmem:[#allocation2 + $0x48] sm:$0xff] %vm45, 0.0
    %57 = vst.msk [vmem:[#allocation2 + $0x50] sm:$0xff] %vm45, 0.0
    %58 = vst.msk [vmem:[#allocation2 + $0x58] sm:$0x3] %vm48, 0.0
    %59 = vst.msk [vmem:[#allocation2 + $0x60] sm:$0xff] %vm45, 0.0
    %60 = vst.msk [vmem:[#allocation2 + $0x68] sm:$0xff] %vm45, 0.0
    %61 = vst.msk [vmem:[#allocation2 + $0x70] sm:$0x3] %vm48, 0.0
    %62 = vst.msk [vmem:[#allocation2 + $0x78] sm:$0xff] %vm45, 0.0
    %63 = vst.msk [vmem:[#allocation2 + $0x80] sm:$0xff] %vm45, 0.0
    %64 = vst.msk [vmem:[#allocation2 + $0x88] sm:$0x3] %vm48, 0.0
    %65 = vst.msk [vmem:[#allocation2 + $0x90] sm:$0xff] %vm45, 0.0
    %66 = vst.msk [vmem:[#allocation2 + $0x98] sm:$0xff] %vm45, 0.0
    %67 = vst.msk [vmem:[#allocation2 + $0xa0] sm:$0x3] %vm48, 0.0
    %68 = vst.msk [vmem:[#allocation2 + $0xa8] sm:$0xff] %vm45, 0.0
    %69 = vst.msk [vmem:[#allocation2 + $0xb0] sm:$0xff] %vm45, 0.0
    %70 = vst.msk [vmem:[#allocation2 + $0xb8] sm:$0x3] %vm48, 0.0
    %71 = vst.msk [vmem:[#allocation2 + $0xc0] sm:$0xff] %vm45, 0.0
    %72 = vst.msk [vmem:[#allocation2 + $0xc8] sm:$0xff] %vm45, 0.0
    %73 = vst.msk [vmem:[#allocation2 + $0xd0] sm:$0x3] %vm48, 0.0
    %74 = vst.msk [vmem:[#allocation2 + $0xd8] sm:$0xff] %vm45, 0.0
    %75 = vst.msk [vmem:[#allocation2 + $0xe0] sm:$0xff] %vm45, 0.0
    %76 = vst.msk [vmem:[#allocation2 + $0xe8] sm:$0x3] %vm48, 0.0
    %77 = vst.msk [vmem:[#allocation2 + $0xf0] sm:$0xff] %vm45, 0.0
    %78 = vst.msk [vmem:[#allocation2 + $0xf8] sm:$0xff] %vm45, 0.0
    %79 = vst.msk [vmem:[#allocation2 + $0x100] sm:$0x3] %vm48, 0.0
    %80 = vst.msk [vmem:[#allocation2 + $0x108] sm:$0xff] %vm45, 0.0
    %81 = vst.msk [vmem:[#allocation2 + $0x110] sm:$0xff] %vm45, 0.0
    %82 = vst.msk [vmem:[#allocation2 + $0x118] sm:$0x3] %vm48, 0.0
    %83 = vst.msk [vmem:[#allocation2 + $0x120] sm:$0xff] %vm45, 0.0
    %84 = vst.msk [vmem:[#allocation2 + $0x128] sm:$0xff] %vm45, 0.0
    %85 = vst.msk [vmem:[#allocation2 + $0x130] sm:$0x3] %vm48, 0.0
    %86 = vst.msk [vmem:[#allocation2 + $0x138] sm:$0xff] %vm45, 0.0
    %87 = vst.msk [vmem:[#allocation2 + $0x140] sm:$0xff] %vm45, 0.0
    %88 = vst.msk [vmem:[#allocation2 + $0x148] sm:$0x3] %vm48, 0.0
    %89 = vst.msk [vmem:[#allocation2 + $0x150] sm:$0xff] %vm45, 0.0
    %90 = vst.msk [vmem:[#allocation2 + $0x158] sm:$0xff] %vm45, 0.0
    %91 = vst.msk [vmem:[#allocation2 + $0x160] sm:$0x3] %vm48, 0.0
    %92 = vst.msk [vmem:[#allocation2 + $0x168] sm:$0xff] %vm45, 0.0
    %93 = vst.msk [vmem:[#allocation2 + $0x170] sm:$0xff] %vm45, 0.0
    %94 = vst.msk [vmem:[#allocation2 + $0x178] sm:$0x3] %vm48, 0.0
    %95 = vst.msk [vmem:[#allocation2 + $0x180] sm:$0xff] %vm45, 0.0
    %96 = vst.msk [vmem:[#allocation2 + $0x188] sm:$0xff] %vm45, 0.0
    %97 = vst.msk [vmem:[#allocation2 + $0x190] sm:$0x3] %vm48, 0.0
    %98 = vst.msk [vmem:[#allocation2 + $0x198] sm:$0xff] %vm45, 0.0
    %99 = vst.msk [vmem:[#allocation2 + $0x1a0] sm:$0xff] %vm45, 0.0
    %100 = vst.msk [vmem:[#allocation2 + $0x1a8] sm:$0x3] %vm48, 0.0
    %101 = vst.msk [vmem:[#allocation2 + $0x1b0] sm:$0xff] %vm45, 0.0
    %102 = vst.msk [vmem:[#allocation2 + $0x1b8] sm:$0xff] %vm45, 0.0
    %103 = vst.msk [vmem:[#allocation2 + $0x1c0] sm:$0x3] %vm48, 0.0
    %104 = vst.msk [vmem:[#allocation2 + $0x1c8] sm:$0xff] %vm45, 0.0
    %105 = vst.msk [vmem:[#allocation2 + $0x1d0] sm:$0xff] %vm45, 0.0
    %106 = vst.msk [vmem:[#allocation2 + $0x1d8] sm:$0x3] %vm48, 0.0
    %107 = vst.msk [vmem:[#allocation2 + $0x1e0] sm:$0xff] %vm45, 0.0
    %108 = vst.msk [vmem:[#allocation2 + $0x1e8] sm:$0xff] %vm45, 0.0
    %109 = vst.msk [vmem:[#allocation2 + $0x1f0] sm:$0x3] %vm48, 0.0
    %110 = vst.msk [vmem:[#allocation2 + $0x1f8] sm:$0xff] %vm45, 0.0
    %111 = vst.msk [vmem:[#allocation2 + $0x200] sm:$0xff] %vm45, 0.0
    %112 = vst.msk [vmem:[#allocation2 + $0x208] sm:$0x3] %vm48, 0.0
    %113 = vst.msk [vmem:[#allocation2 + $0x210] sm:$0xff] %vm45, 0.0
    %114 = vst.msk [vmem:[#allocation2 + $0x218] sm:$0xff] %vm45, 0.0
    %115 = vst.msk [vmem:[#allocation2 + $0x220] sm:$0x3] %vm48, 0.0
    %116 = vst.msk [vmem:[#allocation2 + $0x228] sm:$0xff] %vm45, 0.0
    %117 = vst.msk [vmem:[#allocation2 + $0x230] sm:$0xff] %vm45, 0.0
    %118 = vst.msk [vmem:[#allocation2 + $0x238] sm:$0x3] %vm48, 0.0
    %119 = vst.msk [vmem:[#allocation2 + $0x240] sm:$0xff] %vm45, 0.0
    %120 = vst.msk [vmem:[#allocation2 + $0x248] sm:$0xff] %vm45, 0.0
    %121 = vst.msk [vmem:[#allocation2 + $0x250] sm:$0x3] %vm48, 0.0
    %122 = vst.msk [vmem:[#allocation2 + $0x258] sm:$0xff] %vm45, 0.0
    %123 = vst.msk [vmem:[#allocation2 + $0x260] sm:$0xff] %vm45, 0.0
    %124 = vst.msk [vmem:[#allocation2 + $0x268] sm:$0x3] %vm48, 0.0
    %125 = vst.msk [vmem:[#allocation2 + $0x270] sm:$0xff] %vm45, 0.0
    %126 = vst.msk [vmem:[#allocation2 + $0x278] sm:$0xff] %vm45, 0.0
    %127 = vst.msk [vmem:[#allocation2 + $0x280] sm:$0x3] %vm48, 0.0
    %128 = vst.msk [vmem:[#allocation2 + $0x288] sm:$0xff] %vm45, 0.0
    %129 = vst.msk [vmem:[#allocation2 + $0x290] sm:$0xff] %vm45, 0.0
    %130 = vst.msk [vmem:[#allocation2 + $0x298] sm:$0x3] %vm48, 0.0
    %131 = vst.msk [vmem:[#allocation2 + $0x2a0] sm:$0xff] %vm45, 0.0
    %132 = vst.msk [vmem:[#allocation2 + $0x2a8] sm:$0xff] %vm45, 0.0
    %133 = vst.msk [vmem:[#allocation2 + $0x2b0] sm:$0x3] %vm48, 0.0
    %134 = vst.msk [vmem:[#allocation2 + $0x2b8] sm:$0xff] %vm45, 0.0
    %135 = vst.msk [vmem:[#allocation2 + $0x2c0] sm:$0xff] %vm45, 0.0
    %136 = vst.msk [vmem:[#allocation2 + $0x2c8] sm:$0x3] %vm48, 0.0
    %137 = vst.msk [vmem:[#allocation2 + $0x2d0] sm:$0xff] %vm45, 0.0
    %138 = vst.msk [vmem:[#allocation2 + $0x2d8] sm:$0xff] %vm45, 0.0
    %139 = vst.msk [vmem:[#allocation2 + $0x2e0] sm:$0x3] %vm48, 0.0
    %140 = vst.msk [vmem:[#allocation2 + $0x2e8] sm:$0xff] %vm45, 0.0
    %141 = vst.msk [vmem:[#allocation2 + $0x2f0] sm:$0xff] %vm45, 0.0
    %142 = vst.msk [vmem:[#allocation2 + $0x2f8] sm:$0x3] %vm48, 0.0
    %143 = vst.msk [vmem:[#allocation2 + $0x300] sm:$0xff] %vm45, 0.0
    %144 = vst.msk [vmem:[#allocation2 + $0x308] sm:$0xff] %vm45, 0.0
    %145 = vst.msk [vmem:[#allocation2 + $0x310] sm:$0x3] %vm48, 0.0
    %146 = vst.msk [vmem:[#allocation2 + $0x318] sm:$0xff] %vm45, 0.0
    %147 = vst.msk [vmem:[#allocation2 + $0x320] sm:$0xff] %vm45, 0.0
    %148 = vst.msk [vmem:[#allocation2 + $0x328] sm:$0x3] %vm48, 0.0
    %149 = vst.msk [vmem:[#allocation2 + $0x330] sm:$0xff] %vm45, 0.0
    %150 = vst.msk [vmem:[#allocation2 + $0x338] sm:$0xff] %vm45, 0.0
    %151 = vst.msk [vmem:[#allocation2 + $0x340] sm:$0x3] %vm48, 0.0
    %152 = vst.msk [vmem:[#allocation2 + $0x348] sm:$0xff] %vm45, 0.0
    %153 = vst.msk [vmem:[#allocation2 + $0x350] sm:$0xff] %vm45, 0.0
    %154 = vst.msk [vmem:[#allocation2 + $0x358] sm:$0x3] %vm48, 0.0
    %v155 = vld [vmem:[%s0] sm:$0xff]
    %v156 = vld [vmem:[%s0 + $0x8] sm:$0xff]
    %v157 = vld [vmem:[%s0 + $0x10] sm:$0xff]
    %v158 = vld [vmem:[%s0 + $0x18] sm:$0xff]
    %v159 = vld [vmem:[%s0 + $0x20] sm:$0xff]
    %v160 = vld [vmem:[%s0 + $0x28] sm:$0xff]
    %v161 = vld [vmem:[%s0 + $0x30] sm:$0xff]
    %v162 = vld [vmem:[%s0 + $0x38] sm:$0xff]
    %v163 = vld [vmem:[%s0 + $0x40] sm:$0xff]
    %v164 = vld [vmem:[%s0 + $0x48] sm:$0xff]
    %v165 = vld [vmem:[%s0 + $0x50] sm:$0xff]
    %v166 = vld [vmem:[%s0 + $0x58] sm:$0xff]
    %v167 = vld [vmem:[%s0 + $0x60] sm:$0xff]
    %v168 = vld [vmem:[%s0 + $0x68] sm:$0xff]
    %v169 = vld [vmem:[%s0 + $0x70] sm:$0xff]
    %v170 = vld [vmem:[%s0 + $0x78] sm:$0xff]
    %v171 = vld [vmem:[%s0 + $0x80] sm:$0xff]
    %v172 = vld [vmem:[%s0 + $0x88] sm:$0xff]
    %v173 = vld [vmem:[%s0 + $0x90] sm:$0xff]
    %v174 = vld [vmem:[%s0 + $0x98] sm:$0xff]
    %v175 = vld [vmem:[%s0 + $0xa0] sm:$0xff]
    %v176 = vld [vmem:[%s0 + $0xa8] sm:$0xff]
    %v177 = vld [vmem:[%s0 + $0xb0] sm:$0xff]
    %v178 = vld [vmem:[%s0 + $0xb8] sm:$0xff]
    %v179 = vld [vmem:[%s0 + $0xc0] sm:$0xff]
    %v180 = vld [vmem:[%s0 + $0xc8] sm:$0xff]
    %v181 = vld [vmem:[%s0 + $0xd0] sm:$0xff]
    %v182 = vld [vmem:[%s0 + $0xd8] sm:$0xff]
    %v183 = vld [vmem:[%s0 + $0xe0] sm:$0xff]
    %v184 = vld [vmem:[%s0 + $0xe8] sm:$0xff]
    %v185 = vld [vmem:[%s0 + $0xf0] sm:$0xff]
    %v186 = vld [vmem:[%s0 + $0xf8] sm:$0xff]
    %v187 = vld [vmem:[%s0 + $0x100] sm:$0xff]
    %v188 = vld [vmem:[%s0 + $0x108] sm:$0xff]
    %v189 = vld [vmem:[%s0 + $0x110] sm:$0xff]
    %v190 = vld [vmem:[%s0 + $0x118] sm:$0xff]
    %v191 = vld [vmem:[%s0 + $0x120] sm:$0xff]
    %v192 = vld [vmem:[%s0 + $0x128] sm:$0xff]
    %v193 = vld [vmem:[%s0 + $0x130] sm:$0xff]
    %v194 = vld [vmem:[%s0 + $0x138] sm:$0xff]
    %v195 = vld [vmem:[%s0 + $0x140] sm:$0xff]
    %v196 = vld [vmem:[%s0 + $0x148] sm:$0xff]
    %v197 = vld [vmem:[%s0 + $0x150] sm:$0xff]
    %v198 = vld [vmem:[%s0 + $0x158] sm:$0xff]
    %v199 = vld [vmem:[%s0 + $0x160] sm:$0xff]
    %v200 = vld [vmem:[%s0 + $0x168] sm:$0xff]
    %v201 = vld [vmem:[%s0 + $0x170] sm:$0xff]
    %v202 = vld [vmem:[%s0 + $0x178] sm:$0xff]
    %v203 = vld [vmem:[%s0 + $0x180] sm:$0xff]
    %v204 = vld [vmem:[%s0 + $0x188] sm:$0xff]
    %v205 = vld [vmem:[%s0 + $0x190] sm:$0xff]
    %v206 = vld [vmem:[%s0 + $0x198] sm:$0xff]
    %v207 = vld [vmem:[%s0 + $0x1a0] sm:$0xff]
    %v208 = vld [vmem:[%s0 + $0x1a8] sm:$0xff]
    %v209 = vld [vmem:[%s0 + $0x1b0] sm:$0xff]
    %v210 = vld [vmem:[%s0 + $0x1b8] sm:$0xff]
    %v211 = vld [vmem:[%s0 + $0x1c0] sm:$0xff]
    %v212 = vld [vmem:[%s0 + $0x1c8] sm:$0xff]
    %v213 = vld [vmem:[%s0 + $0x1d0] sm:$0xff]
    %v214 = vld [vmem:[%s0 + $0x1d8] sm:$0xff]
    %v215 = vld [vmem:[%s0 + $0x1e0] sm:$0xff]
    %v216 = vld [vmem:[%s0 + $0x1e8] sm:$0xff]
    %v217 = vld [vmem:[%s0 + $0x1f0] sm:$0xff]
    %v218 = vld [vmem:[%s0 + $0x1f8] sm:$0xff]
    %s219 = scalar_lea.vmem [#allocation2], 24
    %220 = vst.msk [vmem:[%s219 + $0x1] sm:$0xff] %vm45, %v155
    %221 = vst.msk [vmem:[%s219 + $0x9] sm:$0xff] %vm45, %v156
    %222 = vst.msk [vmem:[%s219 + $0x19] sm:$0xff] %vm45, %v157
    %223 = vst.msk [vmem:[%s219 + $0x21] sm:$0xff] %vm45, %v158
    %224 = vst.msk [vmem:[%s219 + $0x31] sm:$0xff] %vm45, %v159
    %225 = vst.msk [vmem:[%s219 + $0x39] sm:$0xff] %vm45, %v160
    %226 = vst.msk [vmem:[%s219 + $0x49] sm:$0xff] %vm45, %v161
    %227 = vst.msk [vmem:[%s219 + $0x51] sm:$0xff] %vm45, %v162
    %228 = vst.msk [vmem:[%s219 + $0x61] sm:$0xff] %vm45, %v163
    %229 = vst.msk [vmem:[%s219 + $0x69] sm:$0xff] %vm45, %v164
    %230 = vst.msk [vmem:[%s219 + $0x79] sm:$0xff] %vm45, %v165
    %231 = vst.msk [vmem:[%s219 + $0x81] sm:$0xff] %vm45, %v166
    %232 = vst.msk [vmem:[%s219 + $0x91] sm:$0xff] %vm45, %v167
    %233 = vst.msk [vmem:[%s219 + $0x99] sm:$0xff] %vm45, %v168
    %234 = vst.msk [vmem:[%s219 + $0xa9] sm:$0xff] %vm45, %v169
    %235 = vst.msk [vmem:[%s219 + $0xb1] sm:$0xff] %vm45, %v170
    %236 = vst.msk [vmem:[%s219 + $0xc1] sm:$0xff] %vm45, %v171
    %237 = vst.msk [vmem:[%s219 + $0xc9] sm:$0xff] %vm45, %v172
    %238 = vst.msk [vmem:[%s219 + $0xd9] sm:$0xff] %vm45, %v173
    %239 = vst.msk [vmem:[%s219 + $0xe1] sm:$0xff] %vm45, %v174
    %240 = vst.msk [vmem:[%s219 + $0xf1] sm:$0xff] %vm45, %v175
    %241 = vst.msk [vmem:[%s219 + $0xf9] sm:$0xff] %vm45, %v176
    %242 = vst.msk [vmem:[%s219 + $0x109] sm:$0xff] %vm45, %v177
    %243 = vst.msk [vmem:[%s219 + $0x111] sm:$0xff] %vm45, %v178
    %244 = vst.msk [vmem:[%s219 + $0x121] sm:$0xff] %vm45, %v179
    %245 = vst.msk [vmem:[%s219 + $0x129] sm:$0xff] %vm45, %v180
    %246 = vst.msk [vmem:[%s219 + $0x139] sm:$0xff] %vm45, %v181
    %247 = vst.msk [vmem:[%s219 + $0x141] sm:$0xff] %vm45, %v182
    %248 = vst.msk [vmem:[%s219 + $0x151] sm:$0xff] %vm45, %v183
    %249 = vst.msk [vmem:[%s219 + $0x159] sm:$0xff] %vm45, %v184
    %250 = vst.msk [vmem:[%s219 + $0x169] sm:$0xff] %vm45, %v185
    %251 = vst.msk [vmem:[%s219 + $0x171] sm:$0xff] %vm45, %v186
    %252 = vst.msk [vmem:[%s219 + $0x1b1] sm:$0xff] %vm45, %v187
    %253 = vst.msk [vmem:[%s219 + $0x1b9] sm:$0xff] %vm45, %v188
    %254 = vst.msk [vmem:[%s219 + $0x1c9] sm:$0xff] %vm45, %v189
    %255 = vst.msk [vmem:[%s219 + $0x1d1] sm:$0xff] %vm45, %v190
    %256 = vst.msk [vmem:[%s219 + $0x1e1] sm:$0xff] %vm45, %v191
    %257 = vst.msk [vmem:[%s219 + $0x1e9] sm:$0xff] %vm45, %v192
    %258 = vst.msk [vmem:[%s219 + $0x1f9] sm:$0xff] %vm45, %v193
    %259 = vst.msk [vmem:[%s219 + $0x201] sm:$0xff] %vm45, %v194
    %260 = vst.msk [vmem:[%s219 + $0x211] sm:$0xff] %vm45, %v195
    %261 = vst.msk [vmem:[%s219 + $0x219] sm:$0xff] %vm45, %v196
    %262 = vst.msk [vmem:[%s219 + $0x229] sm:$0xff] %vm45, %v197
    %263 = vst.msk [vmem:[%s219 + $0x231] sm:$0xff] %vm45, %v198
    %264 = vst.msk [vmem:[%s219 + $0x241] sm:$0xff] %vm45, %v199
    %265 = vst.msk [vmem:[%s219 + $0x249] sm:$0xff] %vm45, %v200
    %266 = vst.msk [vmem:[%s219 + $0x259] sm:$0xff] %vm45, %v201
    %267 = vst.msk [vmem:[%s219 + $0x261] sm:$0xff] %vm45, %v202
    %268 = vst.msk [vmem:[%s219 + $0x271] sm:$0xff] %vm45, %v203
    %269 = vst.msk [vmem:[%s219 + $0x279] sm:$0xff] %vm45, %v204
    %270 = vst.msk [vmem:[%s219 + $0x289] sm:$0xff] %vm45, %v205
    %271 = vst.msk [vmem:[%s219 + $0x291] sm:$0xff] %vm45, %v206
    %272 = vst.msk [vmem:[%s219 + $0x2a1] sm:$0xff] %vm45, %v207
    %273 = vst.msk [vmem:[%s219 + $0x2a9] sm:$0xff] %vm45, %v208
    %274 = vst.msk [vmem:[%s219 + $0x2b9] sm:$0xff] %vm45, %v209
    %275 = vst.msk [vmem:[%s219 + $0x2c1] sm:$0xff] %vm45, %v210
    %276 = vst.msk [vmem:[%s219 + $0x2d1] sm:$0xff] %vm45, %v211
    %277 = vst.msk [vmem:[%s219 + $0x2d9] sm:$0xff] %vm45, %v212
    %278 = vst.msk [vmem:[%s219 + $0x2e9] sm:$0xff] %vm45, %v213
    %279 = vst.msk [vmem:[%s219 + $0x2f1] sm:$0xff] %vm45, %v214
    %280 = vst.msk [vmem:[%s219 + $0x301] sm:$0xff] %vm45, %v215
    %281 = vst.msk [vmem:[%s219 + $0x309] sm:$0xff] %vm45, %v216
    %282 = vst.msk [vmem:[%s219 + $0x319] sm:$0xff] %vm45, %v217
    %283 = vst.msk [vmem:[%s219 + $0x321] sm:$0xff] %vm45, %v218
    %v284 = vld [vmem:[#allocation2] ss:$2 sm:$0xff]
    %s285 = scalar_lea.vmem [#allocation2], 48
    %v286 = vld [vmem:[%s285] ss:$2 sm:$0xff]
    %s287 = scalar_lea.vmem [#allocation2], 96
    %v288 = vld [vmem:[%s287] ss:$2 sm:$0xff]
    %s289 = scalar_lea.vmem [#allocation2], 144
    %v290 = vld [vmem:[%s289] ss:$2 sm:$0xff]
    %s291 = scalar_lea.vmem [#allocation2], 192
    %v292 = vld [vmem:[%s291] ss:$2 sm:$0xff]
    %s293 = scalar_lea.vmem [#allocation2], 240
    %v294 = vld [vmem:[%s293] ss:$2 sm:$0xff]
    %s295 = scalar_lea.vmem [#allocation2], 288
    %v296 = vld [vmem:[%s295] ss:$2 sm:$0xff]
    %s297 = scalar_lea.vmem [#allocation2], 336
    %v298 = vld [vmem:[%s297] ss:$2 sm:$0xff]
    %s299 = scalar_lea.vmem [#allocation2], 432
    %v300 = vld [vmem:[%s299] ss:$2 sm:$0xff]
    %s301 = scalar_lea.vmem [#allocation2], 480
    %v302 = vld [vmem:[%s301] ss:$2 sm:$0xff]
    %s303 = scalar_lea.vmem [#allocation2], 528
    %v304 = vld [vmem:[%s303] ss:$2 sm:$0xff]
    %s305 = scalar_lea.vmem [#allocation2], 576
    %v306 = vld [vmem:[%s305] ss:$2 sm:$0xff]
    %s307 = scalar_lea.vmem [#allocation2], 624
    %v308 = vld [vmem:[%s307] ss:$2 sm:$0xff]
    %s309 = scalar_lea.vmem [#allocation2], 672
    %v310 = vld [vmem:[%s309] ss:$2 sm:$0xff]
    %s311 = scalar_lea.vmem [#allocation2], 720
    %v312 = vld [vmem:[%s311] ss:$2 sm:$0xff]
    %s313 = scalar_lea.vmem [#allocation2], 768
    %v314 = vld [vmem:[%s313] ss:$2 sm:$0xff]
    %s315 = scalar_lea.vmem [#allocation2], 1
    %v316 = vld [vmem:[%s315] ss:$2 sm:$0xff]
    %s317 = scalar_lea.vmem [#allocation2], 49
    %v318 = vld [vmem:[%s317] ss:$2 sm:$0xff]
    %s319 = scalar_lea.vmem [#allocation2], 97
    %v320 = vld [vmem:[%s319] ss:$2 sm:$0xff]
    %s321 = scalar_lea.vmem [#allocation2], 145
    %v322 = vld [vmem:[%s321] ss:$2 sm:$0xff]
    %s323 = scalar_lea.vmem [#allocation2], 193
    %v324 = vld [vmem:[%s323] ss:$2 sm:$0xff]
    %s325 = scalar_lea.vmem [#allocation2], 241
    %v326 = vld [vmem:[%s325] ss:$2 sm:$0xff]
    %s327 = scalar_lea.vmem [#allocation2], 289
    %v328 = vld [vmem:[%s327] ss:$2 sm:$0xff]
    %s329 = scalar_lea.vmem [#allocation2], 337
    %v330 = vld [vmem:[%s329] ss:$2 sm:$0xff]
    %s331 = scalar_lea.vmem [#allocation2], 433
    %v332 = vld [vmem:[%s331] ss:$2 sm:$0xff]
    %s333 = scalar_lea.vmem [#allocation2], 481
    %v334 = vld [vmem:[%s333] ss:$2 sm:$0xff]
    %s335 = scalar_lea.vmem [#allocation2], 529
    %v336 = vld [vmem:[%s335] ss:$2 sm:$0xff]
    %s337 = scalar_lea.vmem [#allocation2], 577
    %v338 = vld [vmem:[%s337] ss:$2 sm:$0xff]
    %s339 = scalar_lea.vmem [#allocation2], 625
    %v340 = vld [vmem:[%s339] ss:$2 sm:$0xff]
    %s341 = scalar_lea.vmem [#allocation2], 673
    %v342 = vld [vmem:[%s341] ss:$2 sm:$0xff]
    %s343 = scalar_lea.vmem [#allocation2], 721
    %v344 = vld [vmem:[%s343] ss:$2 sm:$0xff]
    %s345 = scalar_lea.vmem [#allocation2], 769
    %v346 = vld [vmem:[%s345] ss:$2 sm:$0xff]
    %s347 = scalar_lea.vmem [#allocation2], 2
    %v348 = vld [vmem:[%s347] ss:$2 sm:$0xff]
    %s349 = scalar_lea.vmem [#allocation2], 50
    %v350 = vld [vmem:[%s349] ss:$2 sm:$0xff]
    %s351 = scalar_lea.vmem [#allocation2], 98
    %v352 = vld [vmem:[%s351] ss:$2 sm:$0xff]
    %s353 = scalar_lea.vmem [#allocation2], 146
    %v354 = vld [vmem:[%s353] ss:$2 sm:$0xff]
    %s355 = scalar_lea.vmem [#allocation2], 194
    %v356 = vld [vmem:[%s355] ss:$2 sm:$0xff]
    %s357 = scalar_lea.vmem [#allocation2], 242
    %v358 = vld [vmem:[%s357] ss:$2 sm:$0xff]
    %s359 = scalar_lea.vmem [#allocation2], 290
    %v360 = vld [vmem:[%s359] ss:$2 sm:$0xff]
    %s361 = scalar_lea.vmem [#allocation2], 338
    %v362 = vld [vmem:[%s361] ss:$2 sm:$0xff]
    %s363 = scalar_lea.vmem [#allocation2], 434
    %v364 = vld [vmem:[%s363] ss:$2 sm:$0xff]
    %s365 = scalar_lea.vmem [#allocation2], 482
    %v366 = vld [vmem:[%s365] ss:$2 sm:$0xff]
    %s367 = scalar_lea.vmem [#allocation2], 530
    %v368 = vld [vmem:[%s367] ss:$2 sm:$0xff]
    %s369 = scalar_lea.vmem [#allocation2], 578
    %v370 = vld [vmem:[%s369] ss:$2 sm:$0xff]
    %s371 = scalar_lea.vmem [#allocation2], 626
    %v372 = vld [vmem:[%s371] ss:$2 sm:$0xff]
    %s373 = scalar_lea.vmem [#allocation2], 674
    %v374 = vld [vmem:[%s373] ss:$2 sm:$0xff]
    %s375 = scalar_lea.vmem [#allocation2], 722
    %v376 = vld [vmem:[%s375] ss:$2 sm:$0xff]
    %s377 = scalar_lea.vmem [#allocation2], 770
    %v378 = vld [vmem:[%s377] ss:$2 sm:$0xff]
    %v379 = vld [vmem:[%s219] ss:$2 sm:$0xff]
    %s380 = scalar_lea.vmem %s219, 48 [#allocation2]
    %v381 = vld [vmem:[%s380] ss:$2 sm:$0xff]
    %s382 = scalar_lea.vmem %s219, 96 [#allocation2]
    %v383 = vld [vmem:[%s382] ss:$2 sm:$0xff]
    %s384 = scalar_lea.vmem %s219, 144 [#allocation2]
    %v385 = vld [vmem:[%s384] ss:$2 sm:$0xff]
    %s386 = scalar_lea.vmem %s219, 192 [#allocation2]
    %v387 = vld [vmem:[%s386] ss:$2 sm:$0xff]
    %s388 = scalar_lea.vmem %s219, 240 [#allocation2]
    %v389 = vld [vmem:[%s388] ss:$2 sm:$0xff]
    %s390 = scalar_lea.vmem %s219, 288 [#allocation2]
    %v391 = vld [vmem:[%s390] ss:$2 sm:$0xff]
    %s392 = scalar_lea.vmem %s219, 336 [#allocation2]
    %v393 = vld [vmem:[%s392] ss:$2 sm:$0xff]
    %s394 = scalar_lea.vmem %s219, 432 [#allocation2]
    %v395 = vld [vmem:[%s394] ss:$2 sm:$0xff]
    %s396 = scalar_lea.vmem %s219, 480 [#allocation2]
    %v397 = vld [vmem:[%s396] ss:$2 sm:$0xff]
    %s398 = scalar_lea.vmem %s219, 528 [#allocation2]
    %v399 = vld [vmem:[%s398] ss:$2 sm:$0xff]
    %s400 = scalar_lea.vmem %s219, 576 [#allocation2]
    %v401 = vld [vmem:[%s400] ss:$2 sm:$0xff]
    %s402 = scalar_lea.vmem %s219, 624 [#allocation2]
    %v403 = vld [vmem:[%s402] ss:$2 sm:$0xff]
    %s404 = scalar_lea.vmem %s219, 672 [#allocation2]
    %v405 = vld [vmem:[%s404] ss:$2 sm:$0xff]
    %s406 = scalar_lea.vmem %s219, 720 [#allocation2]
    %v407 = vld [vmem:[%s406] ss:$2 sm:$0xff]
    %s408 = scalar_lea.vmem %s219, 768 [#allocation2]
    %v409 = vld [vmem:[%s408] ss:$2 sm:$0xff]
    %s410 = scalar_lea.vmem %s219, 1 [#allocation2]
    %v411 = vld [vmem:[%s410] ss:$2 sm:$0xff]
    %s412 = scalar_lea.vmem %s219, 49 [#allocation2]
    %v413 = vld [vmem:[%s412] ss:$2 sm:$0xff]
    %s414 = scalar_lea.vmem %s219, 97 [#allocation2]
    %v415 = vld [vmem:[%s414] ss:$2 sm:$0xff]
    %s416 = scalar_lea.vmem %s219, 145 [#allocation2]
    %v417 = vld [vmem:[%s416] ss:$2 sm:$0xff]
    %s418 = scalar_lea.vmem %s219, 193 [#allocation2]
    %v419 = vld [vmem:[%s418] ss:$2 sm:$0xff]
    %s420 = scalar_lea.vmem %s219, 241 [#allocation2]
    %v421 = vld [vmem:[%s420] ss:$2 sm:$0xff]
    %s422 = scalar_lea.vmem %s219, 289 [#allocation2]
    %v423 = vld [vmem:[%s422] ss:$2 sm:$0xff]
    %s424 = scalar_lea.vmem %s219, 337 [#allocation2]
    %v425 = vld [vmem:[%s424] ss:$2 sm:$0xff]
    %s426 = scalar_lea.vmem %s219, 433 [#allocation2]
    %v427 = vld [vmem:[%s426] ss:$2 sm:$0xff]
    %s428 = scalar_lea.vmem %s219, 481 [#allocation2]
    %v429 = vld [vmem:[%s428] ss:$2 sm:$0xff]
    %s430 = scalar_lea.vmem %s219, 529 [#allocation2]
    %v431 = vld [vmem:[%s430] ss:$2 sm:$0xff]
    %s432 = scalar_lea.vmem %s219, 577 [#allocation2]
    %v433 = vld [vmem:[%s432] ss:$2 sm:$0xff]
    %s434 = scalar_lea.vmem %s219, 625 [#allocation2]
    %v435 = vld [vmem:[%s434] ss:$2 sm:$0xff]
    %s436 = scalar_lea.vmem %s219, 673 [#allocation2]
    %v437 = vld [vmem:[%s436] ss:$2 sm:$0xff]
    %s438 = scalar_lea.vmem %s219, 721 [#allocation2]
    %v439 = vld [vmem:[%s438] ss:$2 sm:$0xff]
    %s440 = scalar_lea.vmem %s219, 769 [#allocation2]
    %v441 = vld [vmem:[%s440] ss:$2 sm:$0xff]
    %s442 = scalar_lea.vmem %s219, 2 [#allocation2]
    %v443 = vld [vmem:[%s442] ss:$2 sm:$0xff]
    %s444 = scalar_lea.vmem %s219, 50 [#allocation2]
    %v445 = vld [vmem:[%s444] ss:$2 sm:$0xff]
    %s446 = scalar_lea.vmem %s219, 98 [#allocation2]
    %v447 = vld [vmem:[%s446] ss:$2 sm:$0xff]
    %s448 = scalar_lea.vmem %s219, 146 [#allocation2]
    %v449 = vld [vmem:[%s448] ss:$2 sm:$0xff]
    %s450 = scalar_lea.vmem %s219, 194 [#allocation2]
    %v451 = vld [vmem:[%s450] ss:$2 sm:$0xff]
    %s452 = scalar_lea.vmem %s219, 242 [#allocation2]
    %v453 = vld [vmem:[%s452] ss:$2 sm:$0xff]
    %s454 = scalar_lea.vmem %s219, 290 [#allocation2]
    %v455 = vld [vmem:[%s454] ss:$2 sm:$0xff]
    %s456 = scalar_lea.vmem %s219, 338 [#allocation2]
    %v457 = vld [vmem:[%s456] ss:$2 sm:$0xff]
    %s458 = scalar_lea.vmem %s219, 434 [#allocation2]
    %v459 = vld [vmem:[%s458] ss:$2 sm:$0xff]
    %s460 = scalar_lea.vmem %s219, 482 [#allocation2]
    %v461 = vld [vmem:[%s460] ss:$2 sm:$0xff]
    %s462 = scalar_lea.vmem %s219, 530 [#allocation2]
    %v463 = vld [vmem:[%s462] ss:$2 sm:$0xff]
    %s464 = scalar_lea.vmem %s219, 578 [#allocation2]
    %v465 = vld [vmem:[%s464] ss:$2 sm:$0xff]
    %s466 = scalar_lea.vmem %s219, 626 [#allocation2]
    %v467 = vld [vmem:[%s466] ss:$2 sm:$0xff]
    %s468 = scalar_lea.vmem %s219, 674 [#allocation2]
    %v469 = vld [vmem:[%s468] ss:$2 sm:$0xff]
    %s470 = scalar_lea.vmem %s219, 722 [#allocation2]
    %v471 = vld [vmem:[%s470] ss:$2 sm:$0xff]
    %s472 = scalar_lea.vmem %s219, 770 [#allocation2]
    %v473 = vld [vmem:[%s472] ss:$2 sm:$0xff]
    %s474 = scalar_lea.vmem [#allocation2], 48
    %v475 = vld [vmem:[%s474] ss:$2 sm:$0xff]
    %s476 = scalar_lea.vmem %s474, 48 [#allocation2]
    %v477 = vld [vmem:[%s476] ss:$2 sm:$0xff]
    %s478 = scalar_lea.vmem %s474, 96 [#allocation2]
    %v479 = vld [vmem:[%s478] ss:$2 sm:$0xff]
    %s480 = scalar_lea.vmem %s474, 144 [#allocation2]
    %v481 = vld [vmem:[%s480] ss:$2 sm:$0xff]
    %s482 = scalar_lea.vmem %s474, 192 [#allocation2]
    %v483 = vld [vmem:[%s482] ss:$2 sm:$0xff]
    %s484 = scalar_lea.vmem %s474, 240 [#allocation2]
    %v485 = vld [vmem:[%s484] ss:$2 sm:$0xff]
    %s486 = scalar_lea.vmem %s474, 288 [#allocation2]
    %v487 = vld [vmem:[%s486] ss:$2 sm:$0xff]
    %s488 = scalar_lea.vmem %s474, 336 [#allocation2]
    %v489 = vld [vmem:[%s488] ss:$2 sm:$0xff]
    %s490 = scalar_lea.vmem %s474, 432 [#allocation2]
    %v491 = vld [vmem:[%s490] ss:$2 sm:$0xff]
    %s492 = scalar_lea.vmem %s474, 480 [#allocation2]
    %v493 = vld [vmem:[%s492] ss:$2 sm:$0xff]
    %s494 = scalar_lea.vmem %s474, 528 [#allocation2]
    %v495 = vld [vmem:[%s494] ss:$2 sm:$0xff]
    %s496 = scalar_lea.vmem %s474, 576 [#allocation2]
    %v497 = vld [vmem:[%s496] ss:$2 sm:$0xff]
    %s498 = scalar_lea.vmem %s474, 624 [#allocation2]
    %v499 = vld [vmem:[%s498] ss:$2 sm:$0xff]
    %s500 = scalar_lea.vmem %s474, 672 [#allocation2]
    %v501 = vld [vmem:[%s500] ss:$2 sm:$0xff]
    %s502 = scalar_lea.vmem %s474, 720 [#allocation2]
    %v503 = vld [vmem:[%s502] ss:$2 sm:$0xff]
    %s504 = scalar_lea.vmem %s474, 768 [#allocation2]
    %v505 = vld [vmem:[%s504] ss:$2 sm:$0xff]
    %s506 = scalar_lea.vmem %s474, 1 [#allocation2]
    %v507 = vld [vmem:[%s506] ss:$2 sm:$0xff]
    %s508 = scalar_lea.vmem %s474, 49 [#allocation2]
    %v509 = vld [vmem:[%s508] ss:$2 sm:$0xff]
    %s510 = scalar_lea.vmem %s474, 97 [#allocation2]
    %v511 = vld [vmem:[%s510] ss:$2 sm:$0xff]
    %s512 = scalar_lea.vmem %s474, 145 [#allocation2]
    %v513 = vld [vmem:[%s512] ss:$2 sm:$0xff]
    %s514 = scalar_lea.vmem %s474, 193 [#allocation2]
    %v515 = vld [vmem:[%s514] ss:$2 sm:$0xff]
    %s516 = scalar_lea.vmem %s474, 241 [#allocation2]
    %v517 = vld [vmem:[%s516] ss:$2 sm:$0xff]
    %s518 = scalar_lea.vmem %s474, 289 [#allocation2]
    %v519 = vld [vmem:[%s518] ss:$2 sm:$0xff]
    %s520 = scalar_lea.vmem %s474, 337 [#allocation2]
    %v521 = vld [vmem:[%s520] ss:$2 sm:$0xff]
    %s522 = scalar_lea.vmem %s474, 433 [#allocation2]
    %v523 = vld [vmem:[%s522] ss:$2 sm:$0xff]
    %s524 = scalar_lea.vmem %s474, 481 [#allocation2]
    %v525 = vld [vmem:[%s524] ss:$2 sm:$0xff]
    %s526 = scalar_lea.vmem %s474, 529 [#allocation2]
    %v527 = vld [vmem:[%s526] ss:$2 sm:$0xff]
    %s528 = scalar_lea.vmem %s474, 577 [#allocation2]
    %v529 = vld [vmem:[%s528] ss:$2 sm:$0xff]
    %s530 = scalar_lea.vmem %s474, 625 [#allocation2]
    %v531 = vld [vmem:[%s530] ss:$2 sm:$0xff]
    %s532 = scalar_lea.vmem %s474, 673 [#allocation2]
    %v533 = vld [vmem:[%s532] ss:$2 sm:$0xff]
    %s534 = scalar_lea.vmem %s474, 721 [#allocation2]
    %v535 = vld [vmem:[%s534] ss:$2 sm:$0xff]
    %s536 = scalar_lea.vmem %s474, 769 [#allocation2]
    %v537 = vld [vmem:[%s536] ss:$2 sm:$0xff]
    %s538 = scalar_lea.vmem %s474, 2 [#allocation2]
    %v539 = vld [vmem:[%s538] ss:$2 sm:$0xff]
    %s540 = scalar_lea.vmem %s474, 50 [#allocation2]
    %v541 = vld [vmem:[%s540] ss:$2 sm:$0xff]
    %s542 = scalar_lea.vmem %s474, 98 [#allocation2]
    %v543 = vld [vmem:[%s542] ss:$2 sm:$0xff]
    %s544 = scalar_lea.vmem %s474, 146 [#allocation2]
    %v545 = vld [vmem:[%s544] ss:$2 sm:$0xff]
    %s546 = scalar_lea.vmem %s474, 194 [#allocation2]
    %v547 = vld [vmem:[%s546] ss:$2 sm:$0xff]
    %s548 = scalar_lea.vmem %s474, 242 [#allocation2]
    %v549 = vld [vmem:[%s548] ss:$2 sm:$0xff]
    %s550 = scalar_lea.vmem %s474, 290 [#allocation2]
    %v551 = vld [vmem:[%s550] ss:$2 sm:$0xff]
    %s552 = scalar_lea.vmem %s474, 338 [#allocation2]
    %v553 = vld [vmem:[%s552] ss:$2 sm:$0xff]
    %s554 = scalar_lea.vmem %s474, 434 [#allocation2]
    %v555 = vld [vmem:[%s554] ss:$2 sm:$0xff]
    %s556 = scalar_lea.vmem %s474, 482 [#allocation2]
    %v557 = vld [vmem:[%s556] ss:$2 sm:$0xff]
    %s558 = scalar_lea.vmem %s474, 530 [#allocation2]
    %v559 = vld [vmem:[%s558] ss:$2 sm:$0xff]
    %s560 = scalar_lea.vmem %s474, 578 [#allocation2]
    %v561 = vld [vmem:[%s560] ss:$2 sm:$0xff]
    %s562 = scalar_lea.vmem %s474, 626 [#allocation2]
    %v563 = vld [vmem:[%s562] ss:$2 sm:$0xff]
    %s564 = scalar_lea.vmem %s474, 674 [#allocation2]
    %v565 = vld [vmem:[%s564] ss:$2 sm:$0xff]
    %s566 = scalar_lea.vmem %s474, 722 [#allocation2]
    %v567 = vld [vmem:[%s566] ss:$2 sm:$0xff]
    %s568 = scalar_lea.vmem %s474, 770 [#allocation2]
    %v569 = vld [vmem:[%s568] ss:$2 sm:$0xff]
    %586 = vrot.lane.b32.xlu0 %v316, 4
    %v587 = vpop.permute.xlu0 %586
    %588 = vrot.lane.b32.xlu0 %v318, 4
    %v589 = vpop.permute.xlu0 %588
    %590 = vrot.lane.b32.xlu0 %v320, 4
    %v591 = vpop.permute.xlu0 %590
    %592 = vrot.lane.b32.xlu0 %v322, 4
    %v593 = vpop.permute.xlu0 %592
    %594 = vrot.lane.b32.xlu0 %v324, 4
    %v595 = vpop.permute.xlu0 %594
    %596 = vrot.lane.b32.xlu0 %v326, 4
    %v597 = vpop.permute.xlu0 %596
    %598 = vrot.lane.b32.xlu0 %v328, 4
    %v599 = vpop.permute.xlu0 %598
    %600 = vrot.lane.b32.xlu0 %v330, 4
    %v601 = vpop.permute.xlu0 %600
    %602 = vrot.lane.b32.xlu0 %v332, 4
    %v603 = vpop.permute.xlu0 %602
    %604 = vrot.lane.b32.xlu0 %v334, 4
    %v605 = vpop.permute.xlu0 %604
    %606 = vrot.lane.b32.xlu0 %v336, 4
    %v607 = vpop.permute.xlu0 %606
    %608 = vrot.lane.b32.xlu0 %v338, 4
    %v609 = vpop.permute.xlu0 %608
    %610 = vrot.lane.b32.xlu0 %v340, 4
    %v611 = vpop.permute.xlu0 %610
    %612 = vrot.lane.b32.xlu0 %v342, 4
    %v613 = vpop.permute.xlu0 %612
    %614 = vrot.lane.b32.xlu0 %v344, 4
    %v615 = vpop.permute.xlu0 %614
    %616 = vrot.lane.b32.xlu0 %v346, 4
    %v617 = vpop.permute.xlu0 %616
    %650 = vrot.lane.b32.xlu0 %v348, 8
    %v651 = vpop.permute.xlu0 %650
    %652 = vrot.lane.b32.xlu0 %v350, 8
    %v653 = vpop.permute.xlu0 %652
    %654 = vrot.lane.b32.xlu0 %v352, 8
    %v655 = vpop.permute.xlu0 %654
    %656 = vrot.lane.b32.xlu0 %v354, 8
    %v657 = vpop.permute.xlu0 %656
    %658 = vrot.lane.b32.xlu0 %v356, 8
    %v659 = vpop.permute.xlu0 %658
    %660 = vrot.lane.b32.xlu0 %v358, 8
    %v661 = vpop.permute.xlu0 %660
    %662 = vrot.lane.b32.xlu0 %v360, 8
    %v663 = vpop.permute.xlu0 %662
    %664 = vrot.lane.b32.xlu0 %v362, 8
    %v665 = vpop.permute.xlu0 %664
    %666 = vrot.lane.b32.xlu0 %v364, 8
    %v667 = vpop.permute.xlu0 %666
    %668 = vrot.lane.b32.xlu0 %v366, 8
    %v669 = vpop.permute.xlu0 %668
    %670 = vrot.lane.b32.xlu0 %v368, 8
    %v671 = vpop.permute.xlu0 %670
    %672 = vrot.lane.b32.xlu0 %v370, 8
    %v673 = vpop.permute.xlu0 %672
    %674 = vrot.lane.b32.xlu0 %v372, 8
    %v675 = vpop.permute.xlu0 %674
    %676 = vrot.lane.b32.xlu0 %v374, 8
    %v677 = vpop.permute.xlu0 %676
    %678 = vrot.lane.b32.xlu0 %v376, 8
    %v679 = vpop.permute.xlu0 %678
    %680 = vrot.lane.b32.xlu0 %v378, 8
    %v681 = vpop.permute.xlu0 %680
    %714 = vrot.lane.b32.xlu0 %v379, 12
    %v715 = vpop.permute.xlu0 %714
    %716 = vrot.lane.b32.xlu0 %v381, 12
    %v717 = vpop.permute.xlu0 %716
    %718 = vrot.lane.b32.xlu0 %v383, 12
    %v719 = vpop.permute.xlu0 %718
    %720 = vrot.lane.b32.xlu0 %v385, 12
    %v721 = vpop.permute.xlu0 %720
    %722 = vrot.lane.b32.xlu0 %v387, 12
    %v723 = vpop.permute.xlu0 %722
    %724 = vrot.lane.b32.xlu0 %v389, 12
    %v725 = vpop.permute.xlu0 %724
    %726 = vrot.lane.b32.xlu0 %v391, 12
    %v727 = vpop.permute.xlu0 %726
    %728 = vrot.lane.b32.xlu0 %v393, 12
    %v729 = vpop.permute.xlu0 %728
    %730 = vrot.lane.b32.xlu0 %v395, 12
    %v731 = vpop.permute.xlu0 %730
    %732 = vrot.lane.b32.xlu0 %v397, 12
    %v733 = vpop.permute.xlu0 %732
    %734 = vrot.lane.b32.xlu0 %v399, 12
    %v735 = vpop.permute.xlu0 %734
    %736 = vrot.lane.b32.xlu0 %v401, 12
    %v737 = vpop.permute.xlu0 %736
    %738 = vrot.lane.b32.xlu0 %v403, 12
    %v739 = vpop.permute.xlu0 %738
    %740 = vrot.lane.b32.xlu0 %v405, 12
    %v741 = vpop.permute.xlu0 %740
    %742 = vrot.lane.b32.xlu0 %v407, 12
    %v743 = vpop.permute.xlu0 %742
    %744 = vrot.lane.b32.xlu0 %v409, 12
    %v745 = vpop.permute.xlu0 %744
    %778 = vrot.lane.b32.xlu0 %v411, 16
    %v779 = vpop.permute.xlu0 %778
    %780 = vrot.lane.b32.xlu0 %v413, 16
    %v781 = vpop.permute.xlu0 %780
    %782 = vrot.lane.b32.xlu0 %v415, 16
    %v783 = vpop.permute.xlu0 %782
    %784 = vrot.lane.b32.xlu0 %v417, 16
    %v785 = vpop.permute.xlu0 %784
    %786 = vrot.lane.b32.xlu0 %v419, 16
    %v787 = vpop.permute.xlu0 %786
    %788 = vrot.lane.b32.xlu0 %v421, 16
    %v789 = vpop.permute.xlu0 %788
    %790 = vrot.lane.b32.xlu0 %v423, 16
    %v791 = vpop.permute.xlu0 %790
    %792 = vrot.lane.b32.xlu0 %v425, 16
    %v793 = vpop.permute.xlu0 %792
    %794 = vrot.lane.b32.xlu0 %v427, 16
    %v795 = vpop.permute.xlu0 %794
    %796 = vrot.lane.b32.xlu0 %v429, 16
    %v797 = vpop.permute.xlu0 %796
    %798 = vrot.lane.b32.xlu0 %v431, 16
    %v799 = vpop.permute.xlu0 %798
    %800 = vrot.lane.b32.xlu0 %v433, 16
    %v801 = vpop.permute.xlu0 %800
    %802 = vrot.lane.b32.xlu0 %v435, 16
    %v803 = vpop.permute.xlu0 %802
    %804 = vrot.lane.b32.xlu0 %v437, 16
    %v805 = vpop.permute.xlu0 %804
    %806 = vrot.lane.b32.xlu0 %v439, 16
    %v807 = vpop.permute.xlu0 %806
    %808 = vrot.lane.b32.xlu0 %v441, 16
    %v809 = vpop.permute.xlu0 %808
    %842 = vrot.lane.b32.xlu0 %v443, 20
    %v843 = vpop.permute.xlu0 %842
    %844 = vrot.lane.b32.xlu0 %v445, 20
    %v845 = vpop.permute.xlu0 %844
    %846 = vrot.lane.b32.xlu0 %v447, 20
    %v847 = vpop.permute.xlu0 %846
    %848 = vrot.lane.b32.xlu0 %v449, 20
    %v849 = vpop.permute.xlu0 %848
    %850 = vrot.lane.b32.xlu0 %v451, 20
    %v851 = vpop.permute.xlu0 %850
    %852 = vrot.lane.b32.xlu0 %v453, 20
    %v853 = vpop.permute.xlu0 %852
    %854 = vrot.lane.b32.xlu0 %v455, 20
    %v855 = vpop.permute.xlu0 %854
    %856 = vrot.lane.b32.xlu0 %v457, 20
    %v857 = vpop.permute.xlu0 %856
    %858 = vrot.lane.b32.xlu0 %v459, 20
    %v859 = vpop.permute.xlu0 %858
    %860 = vrot.lane.b32.xlu0 %v461, 20
    %v861 = vpop.permute.xlu0 %860
    %862 = vrot.lane.b32.xlu0 %v463, 20
    %v863 = vpop.permute.xlu0 %862
    %864 = vrot.lane.b32.xlu0 %v465, 20
    %v865 = vpop.permute.xlu0 %864
    %866 = vrot.lane.b32.xlu0 %v467, 20
    %v867 = vpop.permute.xlu0 %866
    %868 = vrot.lane.b32.xlu0 %v469, 20
    %v869 = vpop.permute.xlu0 %868
    %870 = vrot.lane.b32.xlu0 %v471, 20
    %v871 = vpop.permute.xlu0 %870
    %872 = vrot.lane.b32.xlu0 %v473, 20
    %v873 = vpop.permute.xlu0 %872
    %906 = vrot.lane.b32.xlu0 %v475, 24
    %v907 = vpop.permute.xlu0 %906
    %908 = vrot.lane.b32.xlu0 %v477, 24
    %v909 = vpop.permute.xlu0 %908
    %910 = vrot.lane.b32.xlu0 %v479, 24
    %v911 = vpop.permute.xlu0 %910
    %912 = vrot.lane.b32.xlu0 %v481, 24
    %v913 = vpop.permute.xlu0 %912
    %914 = vrot.lane.b32.xlu0 %v483, 24
    %v915 = vpop.permute.xlu0 %914
    %916 = vrot.lane.b32.xlu0 %v485, 24
    %v917 = vpop.permute.xlu0 %916
    %918 = vrot.lane.b32.xlu0 %v487, 24
    %v919 = vpop.permute.xlu0 %918
    %920 = vrot.lane.b32.xlu0 %v489, 24
    %v921 = vpop.permute.xlu0 %920
    %922 = vrot.lane.b32.xlu0 %v491, 24
    %v923 = vpop.permute.xlu0 %922
    %924 = vrot.lane.b32.xlu0 %v493, 24
    %v925 = vpop.permute.xlu0 %924
    %926 = vrot.lane.b32.xlu0 %v495, 24
    %v927 = vpop.permute.xlu0 %926
    %928 = vrot.lane.b32.xlu0 %v497, 24
    %v929 = vpop.permute.xlu0 %928
    %930 = vrot.lane.b32.xlu0 %v499, 24
    %v931 = vpop.permute.xlu0 %930
    %932 = vrot.lane.b32.xlu0 %v501, 24
    %v933 = vpop.permute.xlu0 %932
    %934 = vrot.lane.b32.xlu0 %v503, 24
    %v935 = vpop.permute.xlu0 %934
    %936 = vrot.lane.b32.xlu0 %v505, 24
    %v937 = vpop.permute.xlu0 %936
    %970 = vrot.lane.b32.xlu0 %v507, 28
    %v971 = vpop.permute.xlu0 %970
    %972 = vrot.lane.b32.xlu0 %v509, 28
    %v973 = vpop.permute.xlu0 %972
    %974 = vrot.lane.b32.xlu0 %v511, 28
    %v975 = vpop.permute.xlu0 %974
    %976 = vrot.lane.b32.xlu0 %v513, 28
    %v977 = vpop.permute.xlu0 %976
    %978 = vrot.lane.b32.xlu0 %v515, 28
    %v979 = vpop.permute.xlu0 %978
    %980 = vrot.lane.b32.xlu0 %v517, 28
    %v981 = vpop.permute.xlu0 %980
    %982 = vrot.lane.b32.xlu0 %v519, 28
    %v983 = vpop.permute.xlu0 %982
    %984 = vrot.lane.b32.xlu0 %v521, 28
    %v985 = vpop.permute.xlu0 %984
    %986 = vrot.lane.b32.xlu0 %v523, 28
    %v987 = vpop.permute.xlu0 %986
    %988 = vrot.lane.b32.xlu0 %v525, 28
    %v989 = vpop.permute.xlu0 %988
    %990 = vrot.lane.b32.xlu0 %v527, 28
    %v991 = vpop.permute.xlu0 %990
    %992 = vrot.lane.b32.xlu0 %v529, 28
    %v993 = vpop.permute.xlu0 %992
    %994 = vrot.lane.b32.xlu0 %v531, 28
    %v995 = vpop.permute.xlu0 %994
    %996 = vrot.lane.b32.xlu0 %v533, 28
    %v997 = vpop.permute.xlu0 %996
    %998 = vrot.lane.b32.xlu0 %v535, 28
    %v999 = vpop.permute.xlu0 %998
    %1000 = vrot.lane.b32.xlu0 %v537, 28
    %v1001 = vpop.permute.xlu0 %1000
    %1034 = vrot.lane.b32.xlu0 %v539, 32
    %v1035 = vpop.permute.xlu0 %1034
    %1036 = vrot.lane.b32.xlu0 %v541, 32
    %v1037 = vpop.permute.xlu0 %1036
    %1038 = vrot.lane.b32.xlu0 %v543, 32
    %v1039 = vpop.permute.xlu0 %1038
    %1040 = vrot.lane.b32.xlu0 %v545, 32
    %v1041 = vpop.permute.xlu0 %1040
    %1042 = vrot.lane.b32.xlu0 %v547, 32
    %v1043 = vpop.permute.xlu0 %1042
    %1044 = vrot.lane.b32.xlu0 %v549, 32
    %v1045 = vpop.permute.xlu0 %1044
    %1046 = vrot.lane.b32.xlu0 %v551, 32
    %v1047 = vpop.permute.xlu0 %1046
    %1048 = vrot.lane.b32.xlu0 %v553, 32
    %v1049 = vpop.permute.xlu0 %1048
    %1050 = vrot.lane.b32.xlu0 %v555, 32
    %v1051 = vpop.permute.xlu0 %1050
    %1052 = vrot.lane.b32.xlu0 %v557, 32
    %v1053 = vpop.permute.xlu0 %1052
    %1054 = vrot.lane.b32.xlu0 %v559, 32
    %v1055 = vpop.permute.xlu0 %1054
    %1056 = vrot.lane.b32.xlu0 %v561, 32
    %v1057 = vpop.permute.xlu0 %1056
    %1058 = vrot.lane.b32.xlu0 %v563, 32
    %v1059 = vpop.permute.xlu0 %1058
    %1060 = vrot.lane.b32.xlu0 %v565, 32
    %v1061 = vpop.permute.xlu0 %1060
    %1062 = vrot.lane.b32.xlu0 %v567, 32
    %v1063 = vpop.permute.xlu0 %1062
    %1064 = vrot.lane.b32.xlu0 %v569, 32
    %v1065 = vpop.permute.xlu0 %1064
    %v1082 = vsel %vm45, %v284, %v587
    %v1083 = vsel %vm45, %v286, %v589
    %v1084 = vsel %vm45, %v288, %v591
    %v1085 = vsel %vm45, %v290, %v593
    %v1086 = vsel %vm45, %v292, %v595
    %v1087 = vsel %vm45, %v294, %v597
    %v1088 = vsel %vm45, %v296, %v599
    %v1089 = vsel %vm45, %v298, %v601
    %v1090 = vsel %vm45, %v300, %v603
    %v1091 = vsel %vm45, %v302, %v605
    %v1092 = vsel %vm45, %v304, %v607
    %v1093 = vsel %vm45, %v306, %v609
    %v1094 = vsel %vm45, %v308, %v611
    %v1095 = vsel %vm45, %v310, %v613
    %v1096 = vsel %vm45, %v312, %v615
    %v1097 = vsel %vm45, %v314, %v617
    %vm1098 = vcmask 64512
    %v1099 = vsel %vm1098, %v1082, %v651
    %v1100 = vsel %vm1098, %v1083, %v653
    %v1101 = vsel %vm1098, %v1084, %v655
    %v1102 = vsel %vm1098, %v1085, %v657
    %v1103 = vsel %vm1098, %v1086, %v659
    %v1104 = vsel %vm1098, %v1087, %v661
    %v1105 = vsel %vm1098, %v1088, %v663
    %v1106 = vsel %vm1098, %v1089, %v665
    %v1107 = vsel %vm1098, %v1090, %v667
    %v1108 = vsel %vm1098, %v1091, %v669
    %v1109 = vsel %vm1098, %v1092, %v671
    %v1110 = vsel %vm1098, %v1093, %v673
    %v1111 = vsel %vm1098, %v1094, %v675
    %v1112 = vsel %vm1098, %v1095, %v677
    %v1113 = vsel %vm1098, %v1096, %v679
    %v1114 = vsel %vm1098, %v1097, %v681
    %vm1115 = vcmask 97280
    %v1116 = vsel %vm1115, %v1099, %v715
    %v1117 = vsel %vm1115, %v1100, %v717
    %v1118 = vsel %vm1115, %v1101, %v719
    %v1119 = vsel %vm1115, %v1102, %v721
    %v1120 = vsel %vm1115, %v1103, %v723
    %v1121 = vsel %vm1115, %v1104, %v725
    %v1122 = vsel %vm1115, %v1105, %v727
    %v1123 = vsel %vm1115, %v1106, %v729
    %v1124 = vsel %vm1115, %v1107, %v731
    %v1125 = vsel %vm1115, %v1108, %v733
    %v1126 = vsel %vm1115, %v1109, %v735
    %v1127 = vsel %vm1115, %v1110, %v737
    %v1128 = vsel %vm1115, %v1111, %v739
    %v1129 = vsel %vm1115, %v1112, %v741
    %v1130 = vsel %vm1115, %v1113, %v743
    %v1131 = vsel %vm1115, %v1114, %v745
    %vm1132 = vcmask 130048
    %v1133 = vsel %vm1132, %v1116, %v779
    %v1134 = vsel %vm1132, %v1117, %v781
    %v1135 = vsel %vm1132, %v1118, %v783
    %v1136 = vsel %vm1132, %v1119, %v785
    %v1137 = vsel %vm1132, %v1120, %v787
    %v1138 = vsel %vm1132, %v1121, %v789
    %v1139 = vsel %vm1132, %v1122, %v791
    %v1140 = vsel %vm1132, %v1123, %v793
    %v1141 = vsel %vm1132, %v1124, %v795
    %v1142 = vsel %vm1132, %v1125, %v797
    %v1143 = vsel %vm1132, %v1126, %v799
    %v1144 = vsel %vm1132, %v1127, %v801
    %v1145 = vsel %vm1132, %v1128, %v803
    %v1146 = vsel %vm1132, %v1129, %v805
    %v1147 = vsel %vm1132, %v1130, %v807
    %v1148 = vsel %vm1132, %v1131, %v809
    %vm1149 = vcmask 162816
    %v1150 = vsel %vm1149, %v1133, %v843
    %v1151 = vsel %vm1149, %v1134, %v845
    %v1152 = vsel %vm1149, %v1135, %v847
    %v1153 = vsel %vm1149, %v1136, %v849
    %v1154 = vsel %vm1149, %v1137, %v851
    %v1155 = vsel %vm1149, %v1138, %v853
    %v1156 = vsel %vm1149, %v1139, %v855
    %v1157 = vsel %vm1149, %v1140, %v857
    %v1158 = vsel %vm1149, %v1141, %v859
    %v1159 = vsel %vm1149, %v1142, %v861
    %v1160 = vsel %vm1149, %v1143, %v863
    %v1161 = vsel %vm1149, %v1144, %v865
    %v1162 = vsel %vm1149, %v1145, %v867
    %v1163 = vsel %vm1149, %v1146, %v869
    %v1164 = vsel %vm1149, %v1147, %v871
    %v1165 = vsel %vm1149, %v1148, %v873
    %vm1166 = vcmask 195584
    %v1167 = vsel %vm1166, %v1150, %v907
    %v1168 = vsel %vm1166, %v1151, %v909
    %v1169 = vsel %vm1166, %v1152, %v911
    %v1170 = vsel %vm1166, %v1153, %v913
    %v1171 = vsel %vm1166, %v1154, %v915
    %v1172 = vsel %vm1166, %v1155, %v917
    %v1173 = vsel %vm1166, %v1156, %v919
    %v1174 = vsel %vm1166, %v1157, %v921
    %v1175 = vsel %vm1166, %v1158, %v923
    %v1176 = vsel %vm1166, %v1159, %v925
    %v1177 = vsel %vm1166, %v1160, %v927
    %v1178 = vsel %vm1166, %v1161, %v929
    %v1179 = vsel %vm1166, %v1162, %v931
    %v1180 = vsel %vm1166, %v1163, %v933
    %v1181 = vsel %vm1166, %v1164, %v935
    %v1182 = vsel %vm1166, %v1165, %v937
    %vm1183 = vcmask 228352
    %v1184 = vsel %vm1183, %v1167, %v971
    %v1185 = vsel %vm1183, %v1168, %v973
    %v1186 = vsel %vm1183, %v1169, %v975
    %v1187 = vsel %vm1183, %v1170, %v977
    %v1188 = vsel %vm1183, %v1171, %v979
    %v1189 = vsel %vm1183, %v1172, %v981
    %v1190 = vsel %vm1183, %v1173, %v983
    %v1191 = vsel %vm1183, %v1174, %v985
    %v1192 = vsel %vm1183, %v1175, %v987
    %v1193 = vsel %vm1183, %v1176, %v989
    %v1194 = vsel %vm1183, %v1177, %v991
    %v1195 = vsel %vm1183, %v1178, %v993
    %v1196 = vsel %vm1183, %v1179, %v995
    %v1197 = vsel %vm1183, %v1180, %v997
    %v1198 = vsel %vm1183, %v1181, %v999
    %v1199 = vsel %vm1183, %v1182, %v1001
    %vm1200 = vcmask 261120
    %v1201 = vsel %vm1200, %v1184, %v1035
    %v1202 = vsel %vm1200, %v1185, %v1037
    %v1203 = vsel %vm1200, %v1186, %v1039
    %v1204 = vsel %vm1200, %v1187, %v1041
    %v1205 = vsel %vm1200, %v1188, %v1043
    %v1206 = vsel %vm1200, %v1189, %v1045
    %v1207 = vsel %vm1200, %v1190, %v1047
    %v1208 = vsel %vm1200, %v1191, %v1049
    %v1209 = vsel %vm1200, %v1192, %v1051
    %v1210 = vsel %vm1200, %v1193, %v1053
    %v1211 = vsel %vm1200, %v1194, %v1055
    %v1212 = vsel %vm1200, %v1195, %v1057
    %v1213 = vsel %vm1200, %v1196, %v1059
    %v1214 = vsel %vm1200, %v1197, %v1061
    %v1215 = vsel %vm1200, %v1198, %v1063
    %v1216 = vsel %vm1200, %v1199, %v1065
    %v1217 = vld [vmem:[%s1] sm:$0xff]
    %v1218 = vld [vmem:[%s1 + $0x8] sm:$0xff]
    %v1219 = vld [vmem:[%s1 + $0x10] sm:$0xff]
    %v1220 = vld [vmem:[%s1 + $0x18] sm:$0xff]
    %v1221 = vld [vmem:[%s1 + $0x20] sm:$0xf]
    %v1222 = vld [vmem:[%s2] sm:$0x1]
    %v1224 = vlaneseq
    %v1225 = vshrl.u32 %v1224, 7
    %v1226 = vsub.s32 0, %v1225
    %v1227 = vrot.slane %v1222, %v1226
    %vm1229 = vcmask 293888
    %v1231 = vsel %vm1229, %v1201, 0
    %v1234 = vsel %vm1229, %v1202, 0
    %v1237 = vsel %vm1229, %v1203, 0
    %v1240 = vsel %vm1229, %v1204, 0
    %v1243 = vsel %vm1229, %v1205, 0
    %v1246 = vsel %vm1229, %v1206, 0
    %v1249 = vsel %vm1229, %v1207, 0
    %v1252 = vsel %vm1229, %v1208, 0
    %v1255 = vsel %vm1229, %v1209, 0
    %v1258 = vsel %vm1229, %v1210, 0
    %v1261 = vsel %vm1229, %v1211, 0
    %v1264 = vsel %vm1229, %v1212, 0
    %v1267 = vsel %vm1229, %v1213, 0
    %v1270 = vsel %vm1229, %v1214, 0
    %v1273 = vsel %vm1229, %v1215, 0
    %v1276 = vsel %vm1229, %v1216, 0
    %vm1278 = vcmask 1043456
    %v1280 = vsel %vm1278, %v1221, 0
    %1282 = vmatprep.subr.mxu0 0.0
    %1283 = vmatpush1.msra.mxu0 %v1217
    %1284 = vmatprep.subr.mxu0 0.0
    %1285 = vmatpush1.msra.mxu0 %v1218
    %1286 = vmatprep.subr.mxu0 0.0
    %1287 = vmatpush1.msra.mxu0 %v1219
    %1288 = vmatprep.subr.mxu0 0.0
    %1289 = vmatpush1.msra.mxu0 %v1220
    %1290 = vmatprep.subr.mxu0 0.0
    %1291 = vmatpush1.msra.mxu0 %v1280
    %1292 = vmatprep.subr.mxu0 0.0
    %1293 = vmatpush1.msra.mxu0 0.0
    %1294 = vmatprep.subr.mxu0 0.0
    %1295 = vmatpush1.msra.mxu0 0.0
    %1296 = vmatprep.subr.mxu0 0.0
    %1297 = vmatpush1.msra.mxu0 0.0
    %1298 = vmatprep.subr.mxu0 0.0
    %1299 = vmatpush1.msra.mxu0 0.0
    %1300 = vmatprep.subr.mxu0 0.0
    %1301 = vmatpush1.msra.mxu0 0.0
    %1302 = vmatprep.subr.mxu0 0.0
    %1303 = vmatpush1.msra.mxu0 0.0
    %1304 = vmatprep.subr.mxu0 0.0
    %1305 = vmatpush1.msra.mxu0 0.0
    %1306 = vmatprep.subr.mxu0 0.0
    %1307 = vmatpush1.msra.mxu0 0.0
    %1308 = vmatprep.subr.mxu0 0.0
    %1309 = vmatpush1.msra.mxu0 0.0
    %1310 = vmatprep.subr.mxu0 0.0
    %1311 = vmatpush1.msra.mxu0 0.0
    %1312 = vmatprep.subr.mxu0 0.0
    %1313 = vmatpush1.msra.mxu0 0.0
    %1314 = vmatprep.subr.mxu0 0.0
    %1315 = vmatpush1.msra.mxu0 0.0
    %1316 = vmatprep.subr.mxu0 0.0
    %1317 = vmatpush1.msra.mxu0 0.0
    %1318 = vmatprep.subr.mxu0 0.0
    %1319 = vmatpush1.msra.mxu0 0.0
    %1320 = vmatprep.subr.mxu0 0.0
    %1321 = vmatpush1.msra.mxu0 0.0
    %1322 = vmatprep.subr.mxu0 0.0
    %1323 = vmatpush1.msra.mxu0 0.0
    %1324 = vmatprep.subr.mxu0 0.0
    %1325 = vmatpush1.msra.mxu0 0.0
    %1326 = vmatprep.subr.mxu0 0.0
    %1327 = vmatpush1.msra.mxu0 0.0
    %1328 = vmatprep.subr.mxu0 0.0
    %1329 = vmatpush1.msra.mxu0 0.0
    %1330 = vmatprep.subr.mxu0 0.0
    %1331 = vmatpush1.msra.mxu0 0.0
    %1332 = vmatprep.subr.mxu0 0.0
    %1333 = vmatpush1.msra.mxu0 0.0
    %1334 = vmatprep.subr.mxu0 0.0
    %1335 = vmatpush1.msra.mxu0 0.0
    %1336 = vmatprep.subr.mxu0 0.0
    %1337 = vmatpush1.msra.mxu0 0.0
    %1338 = vmatprep.subr.mxu0 0.0
    %1339 = vmatpush1.msra.mxu0 0.0
    %1340 = vmatprep.subr.mxu0 0.0
    %1341 = vmatpush1.msra.mxu0 0.0
    %1342 = vmatprep.subr.mxu0 0.0
    %1343 = vmatpush1.msra.mxu0 0.0
    %1344 = vmatprep.subr.mxu0 0.0
    %1345 = vmatpush1.msra.mxu0 0.0
    %1346 = vmatprep.mubr.f32.mxu0 0.0
    %1347 = vmatmul.mubr.f32.gmra.mrb[0].mxu0 %v1231
    %v1348 = vpop.f32.mrb[0].mxu0
    %v1349 = vadd.f32 %v1227, %v1348
    %v1350 = vpop.f32.mrb[0].mxu0
    %1351 = vmatprep.mubr.f32.mxu0 0.0
    %1352 = vmatmul.mubr.f32.gmra.mrb[0].mxu0 %v1234
    %v1353 = vpop.f32.mrb[0].mxu0
    %v1354 = vadd.f32 %v1227, %v1353
    %v1355 = vpop.f32.mrb[0].mxu0
    %1356 = vmatprep.mubr.f32.mxu0 0.0
    %1357 = vmatmul.mubr.f32.gmra.mrb[0].mxu0 %v1237
    %v1358 = vpop.f32.mrb[0].mxu0
    %v1359 = vadd.f32 %v1227, %v1358
    %v1360 = vpop.f32.mrb[0].mxu0
    %1361 = vmatprep.mubr.f32.mxu0 0.0
    %1362 = vmatmul.mubr.f32.gmra.mrb[0].mxu0 %v1240
    %v1363 = vpop.f32.mrb[0].mxu0
    %v1364 = vadd.f32 %v1227, %v1363
    %v1365 = vpop.f32.mrb[0].mxu0
    %1366 = vmatprep.mubr.f32.mxu0 0.0
    %1367 = vmatmul.mubr.f32.gmra.mrb[0].mxu0 %v1243
    %v1368 = vpop.f32.mrb[0].mxu0
    %v1369 = vadd.f32 %v1227, %v1368
    %v1370 = vpop.f32.mrb[0].mxu0
    %1371 = vmatprep.mubr.f32.mxu0 0.0
    %1372 = vmatmul.mubr.f32.gmra.mrb[0].mxu0 %v1246
    %v1373 = vpop.f32.mrb[0].mxu0
    %v1374 = vadd.f32 %v1227, %v1373
    %v1375 = vpop.f32.mrb[0].mxu0
    %1376 = vmatprep.mubr.f32.mxu0 0.0
    %1377 = vmatmul.mubr.f32.gmra.mrb[0].mxu0 %v1249
    %v1378 = vpop.f32.mrb[0].mxu0
    %v1379 = vadd.f32 %v1227, %v1378
    %v1380 = vpop.f32.mrb[0].mxu0
    %1381 = vmatprep.mubr.f32.mxu0 0.0
    %1382 = vmatmul.mubr.f32.gmra.mrb[0].mxu0 %v1252
    %v1383 = vpop.f32.mrb[0].mxu0
    %v1384 = vadd.f32 %v1227, %v1383
    %v1385 = vpop.f32.mrb[0].mxu0
    %1386 = vmatprep.mubr.f32.mxu0 0.0
    %1387 = vmatmul.mubr.f32.gmra.mrb[0].mxu0 %v1255
    %v1388 = vpop.f32.mrb[0].mxu0
    %v1389 = vadd.f32 %v1227, %v1388
    %v1390 = vpop.f32.mrb[0].mxu0
    %1391 = vmatprep.mubr.f32.mxu0 0.0
    %1392 = vmatmul.mubr.f32.gmra.mrb[0].mxu0 %v1258
    %v1393 = vpop.f32.mrb[0].mxu0
    %v1394 = vadd.f32 %v1227, %v1393
    %v1395 = vpop.f32.mrb[0].mxu0
    %1396 = vmatprep.mubr.f32.mxu0 0.0
    %1397 = vmatmul.mubr.f32.gmra.mrb[0].mxu0 %v1261
    %v1398 = vpop.f32.mrb[0].mxu0
    %v1399 = vadd.f32 %v1227, %v1398
    %v1400 = vpop.f32.mrb[0].mxu0
    %1401 = vmatprep.mubr.f32.mxu0 0.0
    %1402 = vmatmul.mubr.f32.gmra.mrb[0].mxu0 %v1264
    %v1403 = vpop.f32.mrb[0].mxu0
    %v1404 = vadd.f32 %v1227, %v1403
    %v1405 = vpop.f32.mrb[0].mxu0
    %1406 = vmatprep.mubr.f32.mxu0 0.0
    %1407 = vmatmul.mubr.f32.gmra.mrb[0].mxu0 %v1267
    %v1408 = vpop.f32.mrb[0].mxu0
    %v1409 = vadd.f32 %v1227, %v1408
    %v1410 = vpop.f32.mrb[0].mxu0
    %1411 = vmatprep.mubr.f32.mxu0 0.0
    %1412 = vmatmul.mubr.f32.gmra.mrb[0].mxu0 %v1270
    %v1413 = vpop.f32.mrb[0].mxu0
    %v1414 = vadd.f32 %v1227, %v1413
    %v1415 = vpop.f32.mrb[0].mxu0
    %1416 = vmatprep.mubr.f32.mxu0 0.0
    %1417 = vmatmul.mubr.f32.gmra.mrb[0].mxu0 %v1273
    %v1418 = vpop.f32.mrb[0].mxu0
    %v1419 = vadd.f32 %v1227, %v1418
    %v1420 = vpop.f32.mrb[0].mxu0
    %1421 = vmatprep.mubr.f32.mxu0 0.0
    %1422 = vmatmul.mubr.f32.gmra.mrb[0].mxu0 %v1276
    %v1423 = vpop.f32.mrb[0].mxu0
    %v1424 = vadd.f32 %v1227, %v1423
    %v1425 = vpop.f32.mrb[0].mxu0
    %1426 = vdwg.mxu0
    %v1427 = vmax.f32 %v1349, 0.0
    %v1428 = vmax.f32 %v1354, 0.0
    %v1429 = vmax.f32 %v1359, 0.0
    %v1430 = vmax.f32 %v1364, 0.0
    %v1431 = vmax.f32 %v1369, 0.0
    %v1432 = vmax.f32 %v1374, 0.0
    %v1433 = vmax.f32 %v1379, 0.0
    %v1434 = vmax.f32 %v1384, 0.0
    %v1435 = vmax.f32 %v1389, 0.0
    %v1436 = vmax.f32 %v1394, 0.0
    %v1437 = vmax.f32 %v1399, 0.0
    %v1438 = vmax.f32 %v1404, 0.0
    %v1439 = vmax.f32 %v1409, 0.0
    %v1440 = vmax.f32 %v1414, 0.0
    %v1441 = vmax.f32 %v1419, 0.0
    %v1442 = vmax.f32 %v1424, 0.0
    %1443 = vst.msk [vmem:[#allocation3] sm:$0xff] %vm1098, 0.0
    %1444 = vst.msk [vmem:[#allocation3 + $0x8] sm:$0xff] %vm1098, 0.0
    %vm1445 = vcmask 58368
    %1446 = vst.msk [vmem:[#allocation3 + $0x10] sm:$0x3] %vm1445, 0.0
    %1447 = vst.msk [vmem:[#allocation3 + $0x18] sm:$0xff] %vm1098, 0.0
    %1448 = vst.msk [vmem:[#allocation3 + $0x20] sm:$0xff] %vm1098, 0.0
    %1449 = vst.msk [vmem:[#allocation3 + $0x28] sm:$0x3] %vm1445, 0.0
    %1450 = vst.msk [vmem:[#allocation3 + $0x30] sm:$0xff] %vm1098, 0.0
    %1451 = vst.msk [vmem:[#allocation3 + $0x38] sm:$0xff] %vm1098, 0.0
    %1452 = vst.msk [vmem:[#allocation3 + $0x40] sm:$0x3] %vm1445, 0.0
    %1453 = vst.msk [vmem:[#allocation3 + $0x48] sm:$0xff] %vm1098, 0.0
    %1454 = vst.msk [vmem:[#allocation3 + $0x50] sm:$0xff] %vm1098, 0.0
    %1455 = vst.msk [vmem:[#allocation3 + $0x58] sm:$0x3] %vm1445, 0.0
    %1456 = vst.msk [vmem:[#allocation3 + $0x60] sm:$0xff] %vm1098, 0.0
    %1457 = vst.msk [vmem:[#allocation3 + $0x68] sm:$0xff] %vm1098, 0.0
    %1458 = vst.msk [vmem:[#allocation3 + $0x70] sm:$0x3] %vm1445, 0.0
    %1459 = vst.msk [vmem:[#allocation3 + $0x78] sm:$0xff] %vm1098, 0.0
    %1460 = vst.msk [vmem:[#allocation3 + $0x80] sm:$0xff] %vm1098, 0.0
    %1461 = vst.msk [vmem:[#allocation3 + $0x88] sm:$0x3] %vm1445, 0.0
    %1462 = vst.msk [vmem:[#allocation3 + $0x90] sm:$0xff] %vm1098, 0.0
    %1463 = vst.msk [vmem:[#allocation3 + $0x98] sm:$0xff] %vm1098, 0.0
    %1464 = vst.msk [vmem:[#allocation3 + $0xa0] sm:$0x3] %vm1445, 0.0
    %1465 = vst.msk [vmem:[#allocation3 + $0xa8] sm:$0xff] %vm1098, 0.0
    %1466 = vst.msk [vmem:[#allocation3 + $0xb0] sm:$0xff] %vm1098, 0.0
    %1467 = vst.msk [vmem:[#allocation3 + $0xb8] sm:$0x3] %vm1445, 0.0
    %1468 = vst.msk [vmem:[#allocation3 + $0xc0] sm:$0xff] %vm1098, 0.0
    %1469 = vst.msk [vmem:[#allocation3 + $0xc8] sm:$0xff] %vm1098, 0.0
    %1470 = vst.msk [vmem:[#allocation3 + $0xd0] sm:$0x3] %vm1445, 0.0
    %1471 = vst.msk [vmem:[#allocation3 + $0xd8] sm:$0xff] %vm1098, 0.0
    %1472 = vst.msk [vmem:[#allocation3 + $0xe0] sm:$0xff] %vm1098, 0.0
    %1473 = vst.msk [vmem:[#allocation3 + $0xe8] sm:$0x3] %vm1445, 0.0
    %1474 = vst.msk [vmem:[#allocation3 + $0xf0] sm:$0xff] %vm1098, 0.0
    %1475 = vst.msk [vmem:[#allocation3 + $0xf8] sm:$0xff] %vm1098, 0.0
    %1476 = vst.msk [vmem:[#allocation3 + $0x100] sm:$0x3] %vm1445, 0.0
    %1477 = vst.msk [vmem:[#allocation3 + $0x108] sm:$0xff] %vm1098, 0.0
    %1478 = vst.msk [vmem:[#allocation3 + $0x110] sm:$0xff] %vm1098, 0.0
    %1479 = vst.msk [vmem:[#allocation3 + $0x118] sm:$0x3] %vm1445, 0.0
    %1480 = vst.msk [vmem:[#allocation3 + $0x120] sm:$0xff] %vm1098, 0.0
    %1481 = vst.msk [vmem:[#allocation3 + $0x128] sm:$0xff] %vm1098, 0.0
    %1482 = vst.msk [vmem:[#allocation3 + $0x130] sm:$0x3] %vm1445, 0.0
    %1483 = vst.msk [vmem:[#allocation3 + $0x138] sm:$0xff] %vm1098, 0.0
    %1484 = vst.msk [vmem:[#allocation3 + $0x140] sm:$0xff] %vm1098, 0.0
    %1485 = vst.msk [vmem:[#allocation3 + $0x148] sm:$0x3] %vm1445, 0.0
    %1486 = vst.msk [vmem:[#allocation3 + $0x150] sm:$0xff] %vm1098, 0.0
    %1487 = vst.msk [vmem:[#allocation3 + $0x158] sm:$0xff] %vm1098, 0.0
    %1488 = vst.msk [vmem:[#allocation3 + $0x160] sm:$0x3] %vm1445, 0.0
    %1489 = vst.msk [vmem:[#allocation3 + $0x168] sm:$0xff] %vm1098, 0.0
    %1490 = vst.msk [vmem:[#allocation3 + $0x170] sm:$0xff] %vm1098, 0.0
    %1491 = vst.msk [vmem:[#allocation3 + $0x178] sm:$0x3] %vm1445, 0.0
    %1492 = vst.msk [vmem:[#allocation3 + $0x180] sm:$0xff] %vm1098, 0.0
    %1493 = vst.msk [vmem:[#allocation3 + $0x188] sm:$0xff] %vm1098, 0.0
    %1494 = vst.msk [vmem:[#allocation3 + $0x190] sm:$0x3] %vm1445, 0.0
    %1495 = vst.msk [vmem:[#allocation3 + $0x198] sm:$0xff] %vm1098, 0.0
    %1496 = vst.msk [vmem:[#allocation3 + $0x1a0] sm:$0xff] %vm1098, 0.0
    %1497 = vst.msk [vmem:[#allocation3 + $0x1a8] sm:$0x3] %vm1445, 0.0
    %1498 = vst.msk [vmem:[#allocation3 + $0x1b0] sm:$0xff] %vm1098, 0.0
    %1499 = vst.msk [vmem:[#allocation3 + $0x1b8] sm:$0xff] %vm1098, 0.0
    %1500 = vst.msk [vmem:[#allocation3 + $0x1c0] sm:$0x3] %vm1445, 0.0
    %1501 = vst.msk [vmem:[#allocation3 + $0x1c8] sm:$0xff] %vm1098, 0.0
    %1502 = vst.msk [vmem:[#allocation3 + $0x1d0] sm:$0xff] %vm1098, 0.0
    %1503 = vst.msk [vmem:[#allocation3 + $0x1d8] sm:$0x3] %vm1445, 0.0
    %s1504 = scalar_lea.vmem [#allocation3], 24
    %1505 = vst.msk [vmem:[%s1504 + $0x1] sm:$0xff] %vm1098, %v1427
    %1506 = vst.msk [vmem:[%s1504 + $0x19] sm:$0xff] %vm1098, %v1428
    %1507 = vst.msk [vmem:[%s1504 + $0x31] sm:$0xff] %vm1098, %v1429
    %1508 = vst.msk [vmem:[%s1504 + $0x49] sm:$0xff] %vm1098, %v1430
    %1509 = vst.msk [vmem:[%s1504 + $0x61] sm:$0xff] %vm1098, %v1431
    %1510 = vst.msk [vmem:[%s1504 + $0x79] sm:$0xff] %vm1098, %v1432
    %1511 = vst.msk [vmem:[%s1504 + $0x91] sm:$0xff] %vm1098, %v1433
    %1512 = vst.msk [vmem:[%s1504 + $0xa9] sm:$0xff] %vm1098, %v1434
    %1513 = vst.msk [vmem:[%s1504 + $0xf1] sm:$0xff] %vm1098, %v1435
    %1514 = vst.msk [vmem:[%s1504 + $0x109] sm:$0xff] %vm1098, %v1436
    %1515 = vst.msk [vmem:[%s1504 + $0x121] sm:$0xff] %vm1098, %v1437
    %1516 = vst.msk [vmem:[%s1504 + $0x139] sm:$0xff] %vm1098, %v1438
    %1517 = vst.msk [vmem:[%s1504 + $0x151] sm:$0xff] %vm1098, %v1439
    %1518 = vst.msk [vmem:[%s1504 + $0x169] sm:$0xff] %vm1098, %v1440
    %1519 = vst.msk [vmem:[%s1504 + $0x181] sm:$0xff] %vm1098, %v1441
    %1520 = vst.msk [vmem:[%s1504 + $0x199] sm:$0xff] %vm1098, %v1442
    %v1521 = vld [vmem:[#allocation3] ss:$2 sm:$0xff]
    %s1522 = scalar_lea.vmem [#allocation3], 48
    %v1523 = vld [vmem:[%s1522] ss:$2 sm:$0xff]
    %s1524 = scalar_lea.vmem [#allocation3], 96
    %v1525 = vld [vmem:[%s1524] ss:$2 sm:$0xff]
    %s1526 = scalar_lea.vmem [#allocation3], 144
    %v1527 = vld [vmem:[%s1526] ss:$2 sm:$0xff]
    %s1528 = scalar_lea.vmem [#allocation3], 240
    %v1529 = vld [vmem:[%s1528] ss:$2 sm:$0xff]
    %s1530 = scalar_lea.vmem [#allocation3], 288
    %v1531 = vld [vmem:[%s1530] ss:$2 sm:$0xff]
    %s1532 = scalar_lea.vmem [#allocation3], 336
    %v1533 = vld [vmem:[%s1532] ss:$2 sm:$0xff]
    %s1534 = scalar_lea.vmem [#allocation3], 384
    %v1535 = vld [vmem:[%s1534] ss:$2 sm:$0xff]
    %s1536 = scalar_lea.vmem [#allocation3], 1
    %v1537 = vld [vmem:[%s1536] ss:$2 sm:$0xff]
    %s1538 = scalar_lea.vmem [#allocation3], 49
    %v1539 = vld [vmem:[%s1538] ss:$2 sm:$0xff]
    %s1540 = scalar_lea.vmem [#allocation3], 97
    %v1541 = vld [vmem:[%s1540] ss:$2 sm:$0xff]
    %s1542 = scalar_lea.vmem [#allocation3], 145
    %v1543 = vld [vmem:[%s1542] ss:$2 sm:$0xff]
    %s1544 = scalar_lea.vmem [#allocation3], 241
    %v1545 = vld [vmem:[%s1544] ss:$2 sm:$0xff]
    %s1546 = scalar_lea.vmem [#allocation3], 289
    %v1547 = vld [vmem:[%s1546] ss:$2 sm:$0xff]
    %s1548 = scalar_lea.vmem [#allocation3], 337
    %v1549 = vld [vmem:[%s1548] ss:$2 sm:$0xff]
    %s1550 = scalar_lea.vmem [#allocation3], 385
    %v1551 = vld [vmem:[%s1550] ss:$2 sm:$0xff]
    %s1552 = scalar_lea.vmem [#allocation3], 2
    %v1553 = vld [vmem:[%s1552] ss:$2 sm:$0xff]
    %s1554 = scalar_lea.vmem [#allocation3], 50
    %v1555 = vld [vmem:[%s1554] ss:$2 sm:$0xff]
    %s1556 = scalar_lea.vmem [#allocation3], 98
    %v1557 = vld [vmem:[%s1556] ss:$2 sm:$0xff]
    %s1558 = scalar_lea.vmem [#allocation3], 146
    %v1559 = vld [vmem:[%s1558] ss:$2 sm:$0xff]
    %s1560 = scalar_lea.vmem [#allocation3], 242
    %v1561 = vld [vmem:[%s1560] ss:$2 sm:$0xff]
    %s1562 = scalar_lea.vmem [#allocation3], 290
    %v1563 = vld [vmem:[%s1562] ss:$2 sm:$0xff]
    %s1564 = scalar_lea.vmem [#allocation3], 338
    %v1565 = vld [vmem:[%s1564] ss:$2 sm:$0xff]
    %s1566 = scalar_lea.vmem [#allocation3], 386
    %v1567 = vld [vmem:[%s1566] ss:$2 sm:$0xff]
    %v1568 = vld [vmem:[%s1504] ss:$2 sm:$0xff]
    %s1569 = scalar_lea.vmem %s1504, 48 [#allocation3]
    %v1570 = vld [vmem:[%s1569] ss:$2 sm:$0xff]
    %s1571 = scalar_lea.vmem %s1504, 96 [#allocation3]
    %v1572 = vld [vmem:[%s1571] ss:$2 sm:$0xff]
    %s1573 = scalar_lea.vmem %s1504, 144 [#allocation3]
    %v1574 = vld [vmem:[%s1573] ss:$2 sm:$0xff]
    %s1575 = scalar_lea.vmem %s1504, 240 [#allocation3]
    %v1576 = vld [vmem:[%s1575] ss:$2 sm:$0xff]
    %s1577 = scalar_lea.vmem %s1504, 288 [#allocation3]
    %v1578 = vld [vmem:[%s1577] ss:$2 sm:$0xff]
    %s1579 = scalar_lea.vmem %s1504, 336 [#allocation3]
    %v1580 = vld [vmem:[%s1579] ss:$2 sm:$0xff]
    %s1581 = scalar_lea.vmem %s1504, 384 [#allocation3]
    %v1582 = vld [vmem:[%s1581] ss:$2 sm:$0xff]
    %s1583 = scalar_lea.vmem %s1504, 1 [#allocation3]
    %v1584 = vld [vmem:[%s1583] ss:$2 sm:$0xff]
    %s1585 = scalar_lea.vmem %s1504, 49 [#allocation3]
    %v1586 = vld [vmem:[%s1585] ss:$2 sm:$0xff]
    %s1587 = scalar_lea.vmem %s1504, 97 [#allocation3]
    %v1588 = vld [vmem:[%s1587] ss:$2 sm:$0xff]
    %s1589 = scalar_lea.vmem %s1504, 145 [#allocation3]
    %v1590 = vld [vmem:[%s1589] ss:$2 sm:$0xff]
    %s1591 = scalar_lea.vmem %s1504, 241 [#allocation3]
    %v1592 = vld [vmem:[%s1591] ss:$2 sm:$0xff]
    %s1593 = scalar_lea.vmem %s1504, 289 [#allocation3]
    %v1594 = vld [vmem:[%s1593] ss:$2 sm:$0xff]
    %s1595 = scalar_lea.vmem %s1504, 337 [#allocation3]
    %v1596 = vld [vmem:[%s1595] ss:$2 sm:$0xff]
    %s1597 = scalar_lea.vmem %s1504, 385 [#allocation3]
    %v1598 = vld [vmem:[%s1597] ss:$2 sm:$0xff]
    %s1599 = scalar_lea.vmem %s1504, 2 [#allocation3]
    %v1600 = vld [vmem:[%s1599] ss:$2 sm:$0xff]
    %s1601 = scalar_lea.vmem %s1504, 50 [#allocation3]
    %v1602 = vld [vmem:[%s1601] ss:$2 sm:$0xff]
    %s1603 = scalar_lea.vmem %s1504, 98 [#allocation3]
    %v1604 = vld [vmem:[%s1603] ss:$2 sm:$0xff]
    %s1605 = scalar_lea.vmem %s1504, 146 [#allocation3]
    %v1606 = vld [vmem:[%s1605] ss:$2 sm:$0xff]
    %s1607 = scalar_lea.vmem %s1504, 242 [#allocation3]
    %v1608 = vld [vmem:[%s1607] ss:$2 sm:$0xff]
    %s1609 = scalar_lea.vmem %s1504, 290 [#allocation3]
    %v1610 = vld [vmem:[%s1609] ss:$2 sm:$0xff]
    %s1611 = scalar_lea.vmem %s1504, 338 [#allocation3]
    %v1612 = vld [vmem:[%s1611] ss:$2 sm:$0xff]
    %s1613 = scalar_lea.vmem %s1504, 386 [#allocation3]
    %v1614 = vld [vmem:[%s1613] ss:$2 sm:$0xff]
    %s1615 = scalar_lea.vmem [#allocation3], 48
    %v1616 = vld [vmem:[%s1615] ss:$2 sm:$0xff]
    %s1617 = scalar_lea.vmem %s1615, 48 [#allocation3]
    %v1618 = vld [vmem:[%s1617] ss:$2 sm:$0xff]
    %s1619 = scalar_lea.vmem %s1615, 96 [#allocation3]
    %v1620 = vld [vmem:[%s1619] ss:$2 sm:$0xff]
    %s1621 = scalar_lea.vmem %s1615, 144 [#allocation3]
    %v1622 = vld [vmem:[%s1621] ss:$2 sm:$0xff]
    %s1623 = scalar_lea.vmem %s1615, 240 [#allocation3]
    %v1624 = vld [vmem:[%s1623] ss:$2 sm:$0xff]
    %s1625 = scalar_lea.vmem %s1615, 288 [#allocation3]
    %v1626 = vld [vmem:[%s1625] ss:$2 sm:$0xff]
    %s1627 = scalar_lea.vmem %s1615, 336 [#allocation3]
    %v1628 = vld [vmem:[%s1627] ss:$2 sm:$0xff]
    %s1629 = scalar_lea.vmem %s1615, 384 [#allocation3]
    %v1630 = vld [vmem:[%s1629] ss:$2 sm:$0xff]
    %s1631 = scalar_lea.vmem %s1615, 1 [#allocation3]
    %v1632 = vld [vmem:[%s1631] ss:$2 sm:$0xff]
    %s1633 = scalar_lea.vmem %s1615, 49 [#allocation3]
    %v1634 = vld [vmem:[%s1633] ss:$2 sm:$0xff]
    %s1635 = scalar_lea.vmem %s1615, 97 [#allocation3]
    %v1636 = vld [vmem:[%s1635] ss:$2 sm:$0xff]
    %s1637 = scalar_lea.vmem %s1615, 145 [#allocation3]
    %v1638 = vld [vmem:[%s1637] ss:$2 sm:$0xff]
    %s1639 = scalar_lea.vmem %s1615, 241 [#allocation3]
    %v1640 = vld [vmem:[%s1639] ss:$2 sm:$0xff]
    %s1641 = scalar_lea.vmem %s1615, 289 [#allocation3]
    %v1642 = vld [vmem:[%s1641] ss:$2 sm:$0xff]
    %s1643 = scalar_lea.vmem %s1615, 337 [#allocation3]
    %v1644 = vld [vmem:[%s1643] ss:$2 sm:$0xff]
    %s1645 = scalar_lea.vmem %s1615, 385 [#allocation3]
    %v1646 = vld [vmem:[%s1645] ss:$2 sm:$0xff]
    %s1647 = scalar_lea.vmem %s1615, 2 [#allocation3]
    %v1648 = vld [vmem:[%s1647] ss:$2 sm:$0xff]
    %s1649 = scalar_lea.vmem %s1615, 50 [#allocation3]
    %v1650 = vld [vmem:[%s1649] ss:$2 sm:$0xff]
    %s1651 = scalar_lea.vmem %s1615, 98 [#allocation3]
    %v1652 = vld [vmem:[%s1651] ss:$2 sm:$0xff]
    %s1653 = scalar_lea.vmem %s1615, 146 [#allocation3]
    %v1654 = vld [vmem:[%s1653] ss:$2 sm:$0xff]
    %s1655 = scalar_lea.vmem %s1615, 242 [#allocation3]
    %v1656 = vld [vmem:[%s1655] ss:$2 sm:$0xff]
    %s1657 = scalar_lea.vmem %s1615, 290 [#allocation3]
    %v1658 = vld [vmem:[%s1657] ss:$2 sm:$0xff]
    %s1659 = scalar_lea.vmem %s1615, 338 [#allocation3]
    %v1660 = vld [vmem:[%s1659] ss:$2 sm:$0xff]
    %s1661 = scalar_lea.vmem %s1615, 386 [#allocation3]
    %v1662 = vld [vmem:[%s1661] ss:$2 sm:$0xff]
    %1671 = vrot.lane.b32.xlu0 %v1537, 8
    %v1672 = vpop.permute.xlu0 %1671
    %1673 = vrot.lane.b32.xlu0 %v1539, 8
    %v1674 = vpop.permute.xlu0 %1673
    %1675 = vrot.lane.b32.xlu0 %v1541, 8
    %v1676 = vpop.permute.xlu0 %1675
    %1677 = vrot.lane.b32.xlu0 %v1543, 8
    %v1678 = vpop.permute.xlu0 %1677
    %1679 = vrot.lane.b32.xlu0 %v1545, 8
    %v1680 = vpop.permute.xlu0 %1679
    %1681 = vrot.lane.b32.xlu0 %v1547, 8
    %v1682 = vpop.permute.xlu0 %1681
    %1683 = vrot.lane.b32.xlu0 %v1549, 8
    %v1684 = vpop.permute.xlu0 %1683
    %1685 = vrot.lane.b32.xlu0 %v1551, 8
    %v1686 = vpop.permute.xlu0 %1685
    %1703 = vrot.lane.b32.xlu0 %v1553, 16
    %v1704 = vpop.permute.xlu0 %1703
    %1705 = vrot.lane.b32.xlu0 %v1555, 16
    %v1706 = vpop.permute.xlu0 %1705
    %1707 = vrot.lane.b32.xlu0 %v1557, 16
    %v1708 = vpop.permute.xlu0 %1707
    %1709 = vrot.lane.b32.xlu0 %v1559, 16
    %v1710 = vpop.permute.xlu0 %1709
    %1711 = vrot.lane.b32.xlu0 %v1561, 16
    %v1712 = vpop.permute.xlu0 %1711
    %1713 = vrot.lane.b32.xlu0 %v1563, 16
    %v1714 = vpop.permute.xlu0 %1713
    %1715 = vrot.lane.b32.xlu0 %v1565, 16
    %v1716 = vpop.permute.xlu0 %1715
    %1717 = vrot.lane.b32.xlu0 %v1567, 16
    %v1718 = vpop.permute.xlu0 %1717
    %1735 = vrot.lane.b32.xlu0 %v1568, 24
    %v1736 = vpop.permute.xlu0 %1735
    %1737 = vrot.lane.b32.xlu0 %v1570, 24
    %v1738 = vpop.permute.xlu0 %1737
    %1739 = vrot.lane.b32.xlu0 %v1572, 24
    %v1740 = vpop.permute.xlu0 %1739
    %1741 = vrot.lane.b32.xlu0 %v1574, 24
    %v1742 = vpop.permute.xlu0 %1741
    %1743 = vrot.lane.b32.xlu0 %v1576, 24
    %v1744 = vpop.permute.xlu0 %1743
    %1745 = vrot.lane.b32.xlu0 %v1578, 24
    %v1746 = vpop.permute.xlu0 %1745
    %1747 = vrot.lane.b32.xlu0 %v1580, 24
    %v1748 = vpop.permute.xlu0 %1747
    %1749 = vrot.lane.b32.xlu0 %v1582, 24
    %v1750 = vpop.permute.xlu0 %1749
    %1767 = vrot.lane.b32.xlu0 %v1584, 32
    %v1768 = vpop.permute.xlu0 %1767
    %1769 = vrot.lane.b32.xlu0 %v1586, 32
    %v1770 = vpop.permute.xlu0 %1769
    %1771 = vrot.lane.b32.xlu0 %v1588, 32
    %v1772 = vpop.permute.xlu0 %1771
    %1773 = vrot.lane.b32.xlu0 %v1590, 32
    %v1774 = vpop.permute.xlu0 %1773
    %1775 = vrot.lane.b32.xlu0 %v1592, 32
    %v1776 = vpop.permute.xlu0 %1775
    %1777 = vrot.lane.b32.xlu0 %v1594, 32
    %v1778 = vpop.permute.xlu0 %1777
    %1779 = vrot.lane.b32.xlu0 %v1596, 32
    %v1780 = vpop.permute.xlu0 %1779
    %1781 = vrot.lane.b32.xlu0 %v1598, 32
    %v1782 = vpop.permute.xlu0 %1781
    %1799 = vrot.lane.b32.xlu0 %v1600, 40
    %v1800 = vpop.permute.xlu0 %1799
    %1801 = vrot.lane.b32.xlu0 %v1602, 40
    %v1802 = vpop.permute.xlu0 %1801
    %1803 = vrot.lane.b32.xlu0 %v1604, 40
    %v1804 = vpop.permute.xlu0 %1803
    %1805 = vrot.lane.b32.xlu0 %v1606, 40
    %v1806 = vpop.permute.xlu0 %1805
    %1807 = vrot.lane.b32.xlu0 %v1608, 40
    %v1808 = vpop.permute.xlu0 %1807
    %1809 = vrot.lane.b32.xlu0 %v1610, 40
    %v1810 = vpop.permute.xlu0 %1809
    %1811 = vrot.lane.b32.xlu0 %v1612, 40
    %v1812 = vpop.permute.xlu0 %1811
    %1813 = vrot.lane.b32.xlu0 %v1614, 40
    %v1814 = vpop.permute.xlu0 %1813
    %1831 = vrot.lane.b32.xlu0 %v1616, 48
    %v1832 = vpop.permute.xlu0 %1831
    %1833 = vrot.lane.b32.xlu0 %v1618, 48
    %v1834 = vpop.permute.xlu0 %1833
    %1835 = vrot.lane.b32.xlu0 %v1620, 48
    %v1836 = vpop.permute.xlu0 %1835
    %1837 = vrot.lane.b32.xlu0 %v1622, 48
    %v1838 = vpop.permute.xlu0 %1837
    %1839 = vrot.lane.b32.xlu0 %v1624, 48
    %v1840 = vpop.permute.xlu0 %1839
    %1841 = vrot.lane.b32.xlu0 %v1626, 48
    %v1842 = vpop.permute.xlu0 %1841
    %1843 = vrot.lane.b32.xlu0 %v1628, 48
    %v1844 = vpop.permute.xlu0 %1843
    %1845 = vrot.lane.b32.xlu0 %v1630, 48
    %v1846 = vpop.permute.xlu0 %1845
    %1863 = vrot.lane.b32.xlu0 %v1632, 56
    %v1864 = vpop.permute.xlu0 %1863
    %1865 = vrot.lane.b32.xlu0 %v1634, 56
    %v1866 = vpop.permute.xlu0 %1865
    %1867 = vrot.lane.b32.xlu0 %v1636, 56
    %v1868 = vpop.permute.xlu0 %1867
    %1869 = vrot.lane.b32.xlu0 %v1638, 56
    %v1870 = vpop.permute.xlu0 %1869
    %1871 = vrot.lane.b32.xlu0 %v1640, 56
    %v1872 = vpop.permute.xlu0 %1871
    %1873 = vrot.lane.b32.xlu0 %v1642, 56
    %v1874 = vpop.permute.xlu0 %1873
    %1875 = vrot.lane.b32.xlu0 %v1644, 56
    %v1876 = vpop.permute.xlu0 %1875
    %1877 = vrot.lane.b32.xlu0 %v1646, 56
    %v1878 = vpop.permute.xlu0 %1877
    %1895 = vrot.lane.b32.xlu0 %v1648, 64
    %v1896 = vpop.permute.xlu0 %1895
    %1897 = vrot.lane.b32.xlu0 %v1650, 64
    %v1898 = vpop.permute.xlu0 %1897
    %1899 = vrot.lane.b32.xlu0 %v1652, 64
    %v1900 = vpop.permute.xlu0 %1899
    %1901 = vrot.lane.b32.xlu0 %v1654, 64
    %v1902 = vpop.permute.xlu0 %1901
    %1903 = vrot.lane.b32.xlu0 %v1656, 64
    %v1904 = vpop.permute.xlu0 %1903
    %1905 = vrot.lane.b32.xlu0 %v1658, 64
    %v1906 = vpop.permute.xlu0 %1905
    %1907 = vrot.lane.b32.xlu0 %v1660, 64
    %v1908 = vpop.permute.xlu0 %1907
    %1909 = vrot.lane.b32.xlu0 %v1662, 64
    %v1910 = vpop.permute.xlu0 %1909
    %v1919 = vsel %vm1098, %v1521, %v1672
    %v1920 = vsel %vm1098, %v1523, %v1674
    %v1921 = vsel %vm1098, %v1525, %v1676
    %v1922 = vsel %vm1098, %v1527, %v1678
    %v1923 = vsel %vm1098, %v1529, %v1680
    %v1924 = vsel %vm1098, %v1531, %v1682
    %v1925 = vsel %vm1098, %v1533, %v1684
    %v1926 = vsel %vm1098, %v1535, %v1686
    %v1927 = vsel %vm1132, %v1919, %v1704
    %v1928 = vsel %vm1132, %v1920, %v1706
    %v1929 = vsel %vm1132, %v1921, %v1708
    %v1930 = vsel %vm1132, %v1922, %v1710
    %v1931 = vsel %vm1132, %v1923, %v1712
    %v1932 = vsel %vm1132, %v1924, %v1714
    %v1933 = vsel %vm1132, %v1925, %v1716
    %v1934 = vsel %vm1132, %v1926, %v1718
    %v1935 = vsel %vm1166, %v1927, %v1736
    %v1936 = vsel %vm1166, %v1928, %v1738
    %v1937 = vsel %vm1166, %v1929, %v1740
    %v1938 = vsel %vm1166, %v1930, %v1742
    %v1939 = vsel %vm1166, %v1931, %v1744
    %v1940 = vsel %vm1166, %v1932, %v1746
    %v1941 = vsel %vm1166, %v1933, %v1748
    %v1942 = vsel %vm1166, %v1934, %v1750
    %v1943 = vsel %vm1200, %v1935, %v1768
    %v1944 = vsel %vm1200, %v1936, %v1770
    %v1945 = vsel %vm1200, %v1937, %v1772
    %v1946 = vsel %vm1200, %v1938, %v1774
    %v1947 = vsel %vm1200, %v1939, %v1776
    %v1948 = vsel %vm1200, %v1940, %v1778
    %v1949 = vsel %vm1200, %v1941, %v1780
    %v1950 = vsel %vm1200, %v1942, %v1782
    %vm1951 = vcmask 326656
    %v1952 = vsel %vm1951, %v1943, %v1800
    %v1953 = vsel %vm1951, %v1944, %v1802
    %v1954 = vsel %vm1951, %v1945, %v1804
    %v1955 = vsel %vm1951, %v1946, %v1806
    %v1956 = vsel %vm1951, %v1947, %v1808
    %v1957 = vsel %vm1951, %v1948, %v1810
    %v1958 = vsel %vm1951, %v1949, %v1812
    %v1959 = vsel %vm1951, %v1950, %v1814
    %vm1960 = vcmask 392192
    %v1961 = vsel %vm1960, %v1952, %v1832
    %v1962 = vsel %vm1960, %v1953, %v1834
    %v1963 = vsel %vm1960, %v1954, %v1836
    %v1964 = vsel %vm1960, %v1955, %v1838
    %v1965 = vsel %vm1960, %v1956, %v1840
    %v1966 = vsel %vm1960, %v1957, %v1842
    %v1967 = vsel %vm1960, %v1958, %v1844
    %v1968 = vsel %vm1960, %v1959, %v1846
    %vm1969 = vcmask 457728
    %v1970 = vsel %vm1969, %v1961, %v1864
    %v1971 = vsel %vm1969, %v1962, %v1866
    %v1972 = vsel %vm1969, %v1963, %v1868
    %v1973 = vsel %vm1969, %v1964, %v1870
    %v1974 = vsel %vm1969, %v1965, %v1872
    %v1975 = vsel %vm1969, %v1966, %v1874
    %v1976 = vsel %vm1969, %v1967, %v1876
    %v1977 = vsel %vm1969, %v1968, %v1878
    %vm1978 = vcmask 523264
    %v1979 = vsel %vm1978, %v1970, %v1896
    %v1980 = vsel %vm1978, %v1971, %v1898
    %v1981 = vsel %vm1978, %v1972, %v1900
    %v1982 = vsel %vm1978, %v1973, %v1902
    %v1983 = vsel %vm1978, %v1974, %v1904
    %v1984 = vsel %vm1978, %v1975, %v1906
    %v1985 = vsel %vm1978, %v1976, %v1908
    %v1986 = vsel %vm1978, %v1977, %v1910
    %v1987 = vld [vmem:[%s3] sm:$0xff]
    %v1988 = vld [vmem:[%s3 + $0x8] sm:$0xff]
    %v1989 = vld [vmem:[%s3 + $0x10] sm:$0xff]
    %v1990 = vld [vmem:[%s3 + $0x18] sm:$0xff]
    %v1991 = vld [vmem:[%s3 + $0x20] sm:$0xff]
    %v1992 = vld [vmem:[%s3 + $0x28] sm:$0xff]
    %v1993 = vld [vmem:[%s3 + $0x30] sm:$0xff]
    %v1994 = vld [vmem:[%s3 + $0x38] sm:$0xff]
    %v1995 = vld [vmem:[%s3 + $0x40] sm:$0xff]
    %v1996 = vld [vmem:[%s4] sm:$0x1]
    %v1998 = vlaneseq
    %v1999 = vshrl.u32 %v1998, 7
    %v2000 = vsub.s32 0, %v1999
    %v2001 = vrot.slane %v1996, %v2000
    %vm2003 = vcmask 588800
    %v2005 = vsel %vm2003, %v1979, 0
    %v2008 = vsel %vm2003, %v1980, 0
    %v2011 = vsel %vm2003, %v1981, 0
    %v2014 = vsel %vm2003, %v1982, 0
    %v2017 = vsel %vm2003, %v1983, 0
    %v2020 = vsel %vm2003, %v1984, 0
    %v2023 = vsel %vm2003, %v1985, 0
    %v2026 = vsel %vm2003, %v1986, 0
    %2028 = vmatprep.subr.mxu0 0.0
    %2029 = vmatpush1.msra.mxu0 %v1987
    %2030 = vmatprep.subr.mxu0 0.0
    %2031 = vmatpush1.msra.mxu0 %v1988
    %2032 = vmatprep.subr.mxu0 0.0
    %2033 = vmatpush1.msra.mxu0 %v1989
    %2034 = vmatprep.subr.mxu0 0.0
    %2035 = vmatpush1.msra.mxu0 %v1990
    %2036 = vmatprep.subr.mxu0 0.0
    %2037 = vmatpush1.msra.mxu0 %v1991
    %2038 = vmatprep.subr.mxu0 0.0
    %2039 = vmatpush1.msra.mxu0 %v1992
    %2040 = vmatprep.subr.mxu0 0.0
    %2041 = vmatpush1.msra.mxu0 %v1993
    %2042 = vmatprep.subr.mxu0 0.0
    %2043 = vmatpush1.msra.mxu0 %v1994
    %2044 = vmatprep.subr.mxu0 0.0
    %2045 = vmatpush1.msra.mxu0 %v1995
    %2046 = vmatprep.subr.mxu0 0.0
    %2047 = vmatpush1.msra.mxu0 0.0
    %2048 = vmatprep.subr.mxu0 0.0
    %2049 = vmatpush1.msra.mxu0 0.0
    %2050 = vmatprep.subr.mxu0 0.0
    %2051 = vmatpush1.msra.mxu0 0.0
    %2052 = vmatprep.subr.mxu0 0.0
    %2053 = vmatpush1.msra.mxu0 0.0
    %2054 = vmatprep.subr.mxu0 0.0
    %2055 = vmatpush1.msra.mxu0 0.0
    %2056 = vmatprep.subr.mxu0 0.0
    %2057 = vmatpush1.msra.mxu0 0.0
    %2058 = vmatprep.subr.mxu0 0.0
    %2059 = vmatpush1.msra.mxu0 0.0
    %2060 = vmatprep.subr.mxu0 0.0
    %2061 = vmatpush1.msra.mxu0 0.0
    %2062 = vmatprep.subr.mxu0 0.0
    %2063 = vmatpush1.msra.mxu0 0.0
    %2064 = vmatprep.subr.mxu0 0.0
    %2065 = vmatpush1.msra.mxu0 0.0
    %2066 = vmatprep.subr.mxu0 0.0
    %2067 = vmatpush1.msra.mxu0 0.0
    %2068 = vmatprep.subr.mxu0 0.0
    %2069 = vmatpush1.msra.mxu0 0.0
    %2070 = vmatprep.subr.mxu0 0.0
    %2071 = vmatpush1.msra.mxu0 0.0
    %2072 = vmatprep.subr.mxu0 0.0
    %2073 = vmatpush1.msra.mxu0 0.0
    %2074 = vmatprep.subr.mxu0 0.0
    %2075 = vmatpush1.msra.mxu0 0.0
    %2076 = vmatprep.subr.mxu0 0.0
    %2077 = vmatpush1.msra.mxu0 0.0
    %2078 = vmatprep.subr.mxu0 0.0
    %2079 = vmatpush1.msra.mxu0 0.0
    %2080 = vmatprep.subr.mxu0 0.0
    %2081 = vmatpush1.msra.mxu0 0.0
    %2082 = vmatprep.subr.mxu0 0.0
    %2083 = vmatpush1.msra.mxu0 0.0
    %2084 = vmatprep.subr.mxu0 0.0
    %2085 = vmatpush1.msra.mxu0 0.0
    %2086 = vmatprep.subr.mxu0 0.0
    %2087 = vmatpush1.msra.mxu0 0.0
    %2088 = vmatprep.subr.mxu0 0.0
    %2089 = vmatpush1.msra.mxu0 0.0
    %2090 = vmatprep.subr.mxu0 0.0
    %2091 = vmatpush1.msra.mxu0 0.0
    %2092 = vmatprep.mubr.f32.mxu0 0.0
    %2093 = vmatmul.mubr.f32.gmra.mrb[0].mxu0 %v2005
    %v2094 = vpop.f32.mrb[0].mxu0
    %v2095 = vadd.f32 %v2001, %v2094
    %v2096 = vpop.f32.mrb[0].mxu0
    %2097 = vmatprep.mubr.f32.mxu0 0.0
    %2098 = vmatmul.mubr.f32.gmra.mrb[0].mxu0 %v2008
    %v2099 = vpop.f32.mrb[0].mxu0
    %v2100 = vadd.f32 %v2001, %v2099
    %v2101 = vpop.f32.mrb[0].mxu0
    %2102 = vmatprep.mubr.f32.mxu0 0.0
    %2103 = vmatmul.mubr.f32.gmra.mrb[0].mxu0 %v2011
    %v2104 = vpop.f32.mrb[0].mxu0
    %v2105 = vadd.f32 %v2001, %v2104
    %v2106 = vpop.f32.mrb[0].mxu0
    %2107 = vmatprep.mubr.f32.mxu0 0.0
    %2108 = vmatmul.mubr.f32.gmra.mrb[0].mxu0 %v2014
    %v2109 = vpop.f32.mrb[0].mxu0
    %v2110 = vadd.f32 %v2001, %v2109
    %v2111 = vpop.f32.mrb[0].mxu0
    %2112 = vmatprep.mubr.f32.mxu0 0.0
    %2113 = vmatmul.mubr.f32.gmra.mrb[0].mxu0 %v2017
    %v2114 = vpop.f32.mrb[0].mxu0
    %v2115 = vadd.f32 %v2001, %v2114
    %v2116 = vpop.f32.mrb[0].mxu0
    %2117 = vmatprep.mubr.f32.mxu0 0.0
    %2118 = vmatmul.mubr.f32.gmra.mrb[0].mxu0 %v2020
    %v2119 = vpop.f32.mrb[0].mxu0
    %v2120 = vadd.f32 %v2001, %v2119
    %v2121 = vpop.f32.mrb[0].mxu0
    %2122 = vmatprep.mubr.f32.mxu0 0.0
    %2123 = vmatmul.mubr.f32.gmra.mrb[0].mxu0 %v2023
    %v2124 = vpop.f32.mrb[0].mxu0
    %v2125 = vadd.f32 %v2001, %v2124
    %v2126 = vpop.f32.mrb[0].mxu0
    %2127 = vmatprep.mubr.f32.mxu0 0.0
    %2128 = vmatmul.mubr.f32.gmra.mrb[0].mxu0 %v2026
    %v2129 = vpop.f32.mrb[0].mxu0
    %v2130 = vadd.f32 %v2001, %v2129
    %v2131 = vpop.f32.mrb[0].mxu0
    %2132 = vdwg.mxu0
    %v2133 = vmax.f32 %v2095, 0.0
    %v2134 = vmax.f32 %v2100, 0.0
    %v2135 = vmax.f32 %v2105, 0.0
    %v2136 = vmax.f32 %v2110, 0.0
    %v2137 = vmax.f32 %v2115, 0.0
    %v2138 = vmax.f32 %v2120, 0.0
    %v2139 = vmax.f32 %v2125, 0.0
    %v2140 = vmax.f32 %v2130, 0.0
    %v2143 = vrot.slane %v2137, 7
    %vm2144 = vcmask 1041409
    %v2145 = vsel %vm2144, %v2143, %v2133
    %v2147 = vrot.slane %v2133, 1
    %v2148 = vsel %vm2144, %v2137, %v2147
    %2149 = vrot.lane.b32.xlu0 %v2148, 4
    %v2150 = vpop.permute.xlu0 %2149
    %v2152 = vrot.slane %v2133, 2
    %v2153 = vrot.slane %v2137, 1
    %v2154 = vsel %vm2144, %v2153, %v2152
    %2155 = vrot.lane.b32.xlu0 %v2154, 8
    %v2156 = vpop.permute.xlu0 %2155
    %v2158 = vrot.slane %v2133, 3
    %v2159 = vrot.slane %v2137, 2
    %v2160 = vsel %vm2144, %v2159, %v2158
    %2161 = vrot.lane.b32.xlu0 %v2160, 12
    %v2162 = vpop.permute.xlu0 %2161
    %v2166 = vrot.slane %v2138, 7
    %v2167 = vsel %vm2144, %v2166, %v2134
    %2168 = vrot.lane.b32.xlu0 %v2167, 16
    %v2169 = vpop.permute.xlu0 %2168
    %v2171 = vrot.slane %v2134, 1
    %v2172 = vsel %vm2144, %v2138, %v2171
    %2173 = vrot.lane.b32.xlu0 %v2172, 20
    %v2174 = vpop.permute.xlu0 %2173
    %v2176 = vrot.slane %v2134, 2
    %v2177 = vrot.slane %v2138, 1
    %v2178 = vsel %vm2144, %v2177, %v2176
    %2179 = vrot.lane.b32.xlu0 %v2178, 24
    %v2180 = vpop.permute.xlu0 %2179
    %v2182 = vrot.slane %v2134, 3
    %v2183 = vrot.slane %v2138, 2
    %v2184 = vsel %vm2144, %v2183, %v2182
    %2185 = vrot.lane.b32.xlu0 %v2184, 28
    %v2186 = vpop.permute.xlu0 %2185
    %v2190 = vrot.slane %v2139, 7
    %v2191 = vsel %vm2144, %v2190, %v2135
    %2192 = vrot.lane.b32.xlu0 %v2191, 32
    %v2193 = vpop.permute.xlu0 %2192
    %v2195 = vrot.slane %v2135, 1
    %v2196 = vsel %vm2144, %v2139, %v2195
    %2197 = vrot.lane.b32.xlu0 %v2196, 36
    %v2198 = vpop.permute.xlu0 %2197
    %v2200 = vrot.slane %v2135, 2
    %v2201 = vrot.slane %v2139, 1
    %v2202 = vsel %vm2144, %v2201, %v2200
    %2203 = vrot.lane.b32.xlu0 %v2202, 40
    %v2204 = vpop.permute.xlu0 %2203
    %v2206 = vrot.slane %v2135, 3
    %v2207 = vrot.slane %v2139, 2
    %v2208 = vsel %vm2144, %v2207, %v2206
    %2209 = vrot.lane.b32.xlu0 %v2208, 44
    %v2210 = vpop.permute.xlu0 %2209
    %v2214 = vrot.slane %v2140, 7
    %v2215 = vsel %vm2144, %v2214, %v2136
    %2216 = vrot.lane.b32.xlu0 %v2215, 48
    %v2217 = vpop.permute.xlu0 %2216
    %v2219 = vrot.slane %v2136, 1
    %v2220 = vsel %vm2144, %v2140, %v2219
    %2221 = vrot.lane.b32.xlu0 %v2220, 52
    %v2222 = vpop.permute.xlu0 %2221
    %v2224 = vrot.slane %v2136, 2
    %v2225 = vrot.slane %v2140, 1
    %v2226 = vsel %vm2144, %v2225, %v2224
    %2227 = vrot.lane.b32.xlu0 %v2226, 56
    %v2228 = vpop.permute.xlu0 %2227
    %v2230 = vrot.slane %v2136, 3
    %v2231 = vrot.slane %v2140, 2
    %v2232 = vsel %vm2144, %v2231, %v2230
    %2233 = vrot.lane.b32.xlu0 %v2232, 60
    %v2234 = vpop.permute.xlu0 %2233
    %v2236 = vsel %vm45, %v2145, %v2150
    %v2237 = vsel %vm1098, %v2236, %v2156
    %v2238 = vsel %vm1115, %v2237, %v2162
    %v2239 = vsel %vm1132, %v2238, %v2169
    %v2240 = vsel %vm1149, %v2239, %v2174
    %v2241 = vsel %vm1166, %v2240, %v2180
    %v2242 = vsel %vm1183, %v2241, %v2186
    %v2243 = vsel %vm1200, %v2242, %v2193
    %v2244 = vsel %vm1229, %v2243, %v2198
    %v2245 = vsel %vm1951, %v2244, %v2204
    %vm2246 = vcmask 359424
    %v2247 = vsel %vm2246, %v2245, %v2210
    %v2248 = vsel %vm1960, %v2247, %v2217
    %vm2249 = vcmask 424960
    %v2250 = vsel %vm2249, %v2248, %v2222
    %v2251 = vsel %vm1969, %v2250, %v2228
    %vm2252 = vcmask 490496
    %v2253 = vsel %vm2252, %v2251, %v2234
    %v2254 = vld [vmem:[%s5] sm:$0xff]
    %v2255 = vld [vmem:[%s5 + $0x8] sm:$0xff]
    %v2256 = vld [vmem:[%s5 + $0x10] sm:$0xff]
    %v2257 = vld [vmem:[%s5 + $0x18] sm:$0xff]
    %v2258 = vld [vmem:[%s5 + $0x20] sm:$0xff]
    %v2259 = vld [vmem:[%s5 + $0x28] sm:$0xff]
    %v2260 = vld [vmem:[%s5 + $0x30] sm:$0xff]
    %v2261 = vld [vmem:[%s5 + $0x38] sm:$0xff]
    %v2262 = vld [vmem:[%s6] sm:$0x1]
    %v2264 = vlaneseq
    %v2265 = vshrl.u32 %v2264, 7
    %v2266 = vsub.s32 0, %v2265
    %v2267 = vrot.slane %v2262, %v2266
    %v2270 = vsel %vm1978, %v2253, 0
    %2272 = vmatprep.subr.mxu0 0.0
    %2273 = vmatpush1.msra.mxu0 %v2254
    %2274 = vmatprep.subr.mxu0 0.0
    %2275 = vmatpush1.msra.mxu0 %v2255
    %2276 = vmatprep.subr.mxu0 0.0
    %2277 = vmatpush1.msra.mxu0 %v2256
    %2278 = vmatprep.subr.mxu0 0.0
    %2279 = vmatpush1.msra.mxu0 %v2257
    %2280 = vmatprep.subr.mxu0 0.0
    %2281 = vmatpush1.msra.mxu0 %v2258
    %2282 = vmatprep.subr.mxu0 0.0
    %2283 = vmatpush1.msra.mxu0 %v2259
    %2284 = vmatprep.subr.mxu0 0.0
    %2285 = vmatpush1.msra.mxu0 %v2260
    %2286 = vmatprep.subr.mxu0 0.0
    %2287 = vmatpush1.msra.mxu0 %v2261
    %2288 = vmatprep.subr.mxu0 0.0
    %2289 = vmatpush1.msra.mxu0 0.0
    %2290 = vmatprep.subr.mxu0 0.0
    %2291 = vmatpush1.msra.mxu0 0.0
    %2292 = vmatprep.subr.mxu0 0.0
    %2293 = vmatpush1.msra.mxu0 0.0
    %2294 = vmatprep.subr.mxu0 0.0
    %2295 = vmatpush1.msra.mxu0 0.0
    %2296 = vmatprep.subr.mxu0 0.0
    %2297 = vmatpush1.msra.mxu0 0.0
    %2298 = vmatprep.subr.mxu0 0.0
    %2299 = vmatpush1.msra.mxu0 0.0
    %2300 = vmatprep.subr.mxu0 0.0
    %2301 = vmatpush1.msra.mxu0 0.0
    %2302 = vmatprep.subr.mxu0 0.0
    %2303 = vmatpush1.msra.mxu0 0.0
    %2304 = vmatprep.subr.mxu0 0.0
    %2305 = vmatpush1.msra.mxu0 0.0
    %2306 = vmatprep.subr.mxu0 0.0
    %2307 = vmatpush1.msra.mxu0 0.0
    %2308 = vmatprep.subr.mxu0 0.0
    %2309 = vmatpush1.msra.mxu0 0.0
    %2310 = vmatprep.subr.mxu0 0.0
    %2311 = vmatpush1.msra.mxu0 0.0
    %2312 = vmatprep.subr.mxu0 0.0
    %2313 = vmatpush1.msra.mxu0 0.0
    %2314 = vmatprep.subr.mxu0 0.0
    %2315 = vmatpush1.msra.mxu0 0.0
    %2316 = vmatprep.subr.mxu0 0.0
    %2317 = vmatpush1.msra.mxu0 0.0
    %2318 = vmatprep.subr.mxu0 0.0
    %2319 = vmatpush1.msra.mxu0 0.0
    %2320 = vmatprep.subr.mxu0 0.0
    %2321 = vmatpush1.msra.mxu0 0.0
    %2322 = vmatprep.subr.mxu0 0.0
    %2323 = vmatpush1.msra.mxu0 0.0
    %2324 = vmatprep.subr.mxu0 0.0
    %2325 = vmatpush1.msra.mxu0 0.0
    %2326 = vmatprep.subr.mxu0 0.0
    %2327 = vmatpush1.msra.mxu0 0.0
    %2328 = vmatprep.subr.mxu0 0.0
    %2329 = vmatpush1.msra.mxu0 0.0
    %2330 = vmatprep.subr.mxu0 0.0
    %2331 = vmatpush1.msra.mxu0 0.0
    %2332 = vmatprep.subr.mxu0 0.0
    %2333 = vmatpush1.msra.mxu0 0.0
    %2334 = vmatprep.subr.mxu0 0.0
    %2335 = vmatpush1.msra.mxu0 0.0
    %2336 = vmatprep.mubr.f32.mxu0 0.0
    %2337 = vmatmul.mubr.f32.gmra.mrb[0].mxu0 %v2270
    %v2338 = vpop.f32.mrb[0].mxu0
    %v2339 = vadd.f32 %v2267, %v2338
    %v2340 = vpop.f32.mrb[0].mxu0
    %2341 = vdwg.mxu0
    %v2342 = vld [vmem:[%s7] sm:$0xff]
    %v2343 = vld [vmem:[%s7 + $0x8] sm:$0xff]
    %v2344 = vld [vmem:[%s7 + $0x10] sm:$0xff]
    %v2345 = vld [vmem:[%s7 + $0x18] sm:$0x1]
    %v2346 = vld [vmem:[%s8] sm:$0x1]
    %v2348 = vlaneseq
    %v2349 = vshrl.u32 %v2348, 7
    %v2350 = vsub.s32 0, %v2349
    %v2351 = vrot.slane %v2346, %v2350
    %vm2353 = vcmask 203776
    %v2355 = vsel %vm2353, %v2339, 0
    %vm2357 = vcmask 1040384
    %v2359 = vsel %vm2357, %v2345, 0
    %2361 = vmatprep.subr.mxu0 0.0
    %2362 = vmatpush1.msra.mxu0 %v2342
    %2363 = vmatprep.subr.mxu0 0.0
    %2364 = vmatpush1.msra.mxu0 %v2343
    %2365 = vmatprep.subr.mxu0 0.0
    %2366 = vmatpush1.msra.mxu0 %v2344
    %2367 = vmatprep.subr.mxu0 0.0
    %2368 = vmatpush1.msra.mxu0 %v2359
    %2369 = vmatprep.subr.mxu0 0.0
    %2370 = vmatpush1.msra.mxu0 0.0
    %2371 = vmatprep.subr.mxu0 0.0
    %2372 = vmatpush1.msra.mxu0 0.0
    %2373 = vmatprep.subr.mxu0 0.0
    %2374 = vmatpush1.msra.mxu0 0.0
    %2375 = vmatprep.subr.mxu0 0.0
    %2376 = vmatpush1.msra.mxu0 0.0
    %2377 = vmatprep.subr.mxu0 0.0
    %2378 = vmatpush1.msra.mxu0 0.0
    %2379 = vmatprep.subr.mxu0 0.0
    %2380 = vmatpush1.msra.mxu0 0.0
    %2381 = vmatprep.subr.mxu0 0.0
    %2382 = vmatpush1.msra.mxu0 0.0
    %2383 = vmatprep.subr.mxu0 0.0
    %2384 = vmatpush1.msra.mxu0 0.0
    %2385 = vmatprep.subr.mxu0 0.0
    %2386 = vmatpush1.msra.mxu0 0.0
    %2387 = vmatprep.subr.mxu0 0.0
    %2388 = vmatpush1.msra.mxu0 0.0
    %2389 = vmatprep.subr.mxu0 0.0
    %2390 = vmatpush1.msra.mxu0 0.0
    %2391 = vmatprep.subr.mxu0 0.0
    %2392 = vmatpush1.msra.mxu0 0.0
    %2393 = vmatprep.subr.mxu0 0.0
    %2394 = vmatpush1.msra.mxu0 0.0
    %2395 = vmatprep.subr.mxu0 0.0
    %2396 = vmatpush1.msra.mxu0 0.0
    %2397 = vmatprep.subr.mxu0 0.0
    %2398 = vmatpush1.msra.mxu0 0.0
    %2399 = vmatprep.subr.mxu0 0.0
    %2400 = vmatpush1.msra.mxu0 0.0
    %2401 = vmatprep.subr.mxu0 0.0
    %2402 = vmatpush1.msra.mxu0 0.0
    %2403 = vmatprep.subr.mxu0 0.0
    %2404 = vmatpush1.msra.mxu0 0.0
    %2405 = vmatprep.subr.mxu0 0.0
    %2406 = vmatpush1.msra.mxu0 0.0
    %2407 = vmatprep.subr.mxu0 0.0
    %2408 = vmatpush1.msra.mxu0 0.0
    %2409 = vmatprep.subr.mxu0 0.0
    %2410 = vmatpush1.msra.mxu0 0.0
    %2411 = vmatprep.subr.mxu0 0.0
    %2412 = vmatpush1.msra.mxu0 0.0
    %2413 = vmatprep.subr.mxu0 0.0
    %2414 = vmatpush1.msra.mxu0 0.0
    %2415 = vmatprep.subr.mxu0 0.0
    %2416 = vmatpush1.msra.mxu0 0.0
    %2417 = vmatprep.subr.mxu0 0.0
    %2418 = vmatpush1.msra.mxu0 0.0
    %2419 = vmatprep.subr.mxu0 0.0
    %2420 = vmatpush1.msra.mxu0 0.0
    %2421 = vmatprep.subr.mxu0 0.0
    %2422 = vmatpush1.msra.mxu0 0.0
    %2423 = vmatprep.subr.mxu0 0.0
    %2424 = vmatpush1.msra.mxu0 0.0
    %2425 = vmatprep.mubr.f32.mxu0 0.0
    %2426 = vmatmul.mubr.f32.gmra.mrb[0].mxu0 %v2355
    %v2427 = vpop.f32.mrb[0].mxu0
    %v2428 = vadd.f32 %v2351, %v2427
    %v2429 = vpop.f32.mrb[0].mxu0
    %2430 = vdwg.mxu0
    %vm2431 = vcmask 517120
    %v2432 = vsel %vm2431, %v2428, 0.0
    %v2433 = vrot.slane %v2432, 4
    %v2434 = vadd.f32 %v2432, %v2433
    %v2435 = vrot.slane %v2434, 2
    %v2436 = vadd.f32 %v2434, %v2435
    %v2437 = vrot.slane %v2436, 1
    %v2438 = vadd.f32 %v2436, %v2437
    %v2439 = vrcp.pop 2.0
    %v2440 = vmul.f32 %v2438, %v2439
    %v2441 = vmul.f32 %v2428, %v2428
    %v2442 = vsel %vm2431, %v2441, 0.0
    %v2443 = vrot.slane %v2442, 4
    %v2444 = vadd.f32 %v2442, %v2443
    %v2445 = vrot.slane %v2444, 2
    %v2446 = vadd.f32 %v2444, %v2445
    %v2447 = vrot.slane %v2446, 1
    %v2448 = vadd.f32 %v2446, %v2447
    %v2449 = vmul.f32 %v2448, %v2439
    %v2450 = vmul.f32 %v2440, %v2440
    %v2451 = vsub.f32 %v2449, %v2450
    %v2452 = vmax.f32 %v2451, 0.0
    %v2453 = vsub.f32 %v2428, %v2440
    %v2454 = vadd.f32 %v2452, 1e-05
    %v2455 = vrsqrt.pop %v2454
    %v2456 = vmul.f32 %v2453, %v2455
    %v2457 = vld [vmem:[%s9] sm:$0x1]
    %v2459 = vlaneseq
    %v2460 = vshrl.u32 %v2459, 7
    %v2461 = vsub.s32 0, %v2460
    %v2462 = vrot.slane %v2457, %v2461
    %v2464 = vmul.f32 %v2456, %v2462
    %v2465 = vld [vmem:[%s10] sm:$0x1]
    %v2467 = vlaneseq
    %v2468 = vshrl.u32 %v2467, 7
    %v2469 = vsub.s32 0, %v2468
    %v2470 = vrot.slane %v2465, %v2469
    %v2472 = vadd.f32 %v2464, %v2470
    %v2473 = vmax.f32 %v2472, 0.0
    %v2474 = vld [vmem:[%s11] sm:$0xff]
    %v2475 = vld [vmem:[%s11 + $0x8] sm:$0xff]
    %v2476 = vld [vmem:[%s11 + $0x10] sm:$0xff]
    %v2477 = vld [vmem:[%s11 + $0x18] sm:$0xff]
    %v2478 = vld [vmem:[%s11 + $0x20] sm:$0xff]
    %v2479 = vld [vmem:[%s11 + $0x28] sm:$0xff]
    %v2480 = vld [vmem:[%s11 + $0x30] sm:$0xff]
    %v2481 = vld [vmem:[%s11 + $0x38] sm:$0xff]
    %v2482 = vld [vmem:[%s12] sm:$0x1]
    %v2484 = vlaneseq
    %v2485 = vshrl.u32 %v2484, 7
    %v2486 = vsub.s32 0, %v2485
    %v2487 = vrot.slane %v2482, %v2486
    %v2490 = vsel %vm1978, %v2473, 0
    %2492 = vmatprep.subr.mxu0 0.0
    %2493 = vmatpush1.msra.mxu0 %v2474
    %2494 = vmatprep.subr.mxu0 0.0
    %2495 = vmatpush1.msra.mxu0 %v2475
    %2496 = vmatprep.subr.mxu0 0.0
    %2497 = vmatpush1.msra.mxu0 %v2476
    %2498 = vmatprep.subr.mxu0 0.0
    %2499 = vmatpush1.msra.mxu0 %v2477
    %2500 = vmatprep.subr.mxu0 0.0
    %2501 = vmatpush1.msra.mxu0 %v2478
    %2502 = vmatprep.subr.mxu0 0.0
    %2503 = vmatpush1.msra.mxu0 %v2479
    %2504 = vmatprep.subr.mxu0 0.0
    %2505 = vmatpush1.msra.mxu0 %v2480
    %2506 = vmatprep.subr.mxu0 0.0
    %2507 = vmatpush1.msra.mxu0 %v2481
    %2508 = vmatprep.subr.mxu0 0.0
    %2509 = vmatpush1.msra.mxu0 0.0
    %2510 = vmatprep.subr.mxu0 0.0
    %2511 = vmatpush1.msra.mxu0 0.0
    %2512 = vmatprep.subr.mxu0 0.0
    %2513 = vmatpush1.msra.mxu0 0.0
    %2514 = vmatprep.subr.mxu0 0.0
    %2515 = vmatpush1.msra.mxu0 0.0
    %2516 = vmatprep.subr.mxu0 0.0
    %2517 = vmatpush1.msra.mxu0 0.0
    %2518 = vmatprep.subr.mxu0 0.0
    %2519 = vmatpush1.msra.mxu0 0.0
    %2520 = vmatprep.subr.mxu0 0.0
    %2521 = vmatpush1.msra.mxu0 0.0
    %2522 = vmatprep.subr.mxu0 0.0
    %2523 = vmatpush1.msra.mxu0 0.0
    %2524 = vmatprep.subr.mxu0 0.0
    %2525 = vmatpush1.msra.mxu0 0.0
    %2526 = vmatprep.subr.mxu0 0.0
    %2527 = vmatpush1.msra.mxu0 0.0
    %2528 = vmatprep.subr.mxu0 0.0
    %2529 = vmatpush1.msra.mxu0 0.0
    %2530 = vmatprep.subr.mxu0 0.0
    %2531 = vmatpush1.msra.mxu0 0.0
    %2532 = vmatprep.subr.mxu0 0.0
    %2533 = vmatpush1.msra.mxu0 0.0
    %2534 = vmatprep.subr.mxu0 0.0
    %2535 = vmatpush1.msra.mxu0 0.0
    %2536 = vmatprep.subr.mxu0 0.0
    %2537 = vmatpush1.msra.mxu0 0.0
    %2538 = vmatprep.subr.mxu0 0.0
    %2539 = vmatpush1.msra.mxu0 0.0
    %2540 = vmatprep.subr.mxu0 0.0
    %2541 = vmatpush1.msra.mxu0 0.0
    %2542 = vmatprep.subr.mxu0 0.0
    %2543 = vmatpush1.msra.mxu0 0.0
    %2544 = vmatprep.subr.mxu0 0.0
    %2545 = vmatpush1.msra.mxu0 0.0
    %2546 = vmatprep.subr.mxu0 0.0
    %2547 = vmatpush1.msra.mxu0 0.0
    %2548 = vmatprep.subr.mxu0 0.0
    %2549 = vmatpush1.msra.mxu0 0.0
    %2550 = vmatprep.subr.mxu0 0.0
    %2551 = vmatpush1.msra.mxu0 0.0
    %2552 = vmatprep.subr.mxu0 0.0
    %2553 = vmatpush1.msra.mxu0 0.0
    %2554 = vmatprep.subr.mxu0 0.0
    %2555 = vmatpush1.msra.mxu0 0.0
    %2556 = vmatprep.mubr.f32.mxu0 0.0
    %2557 = vmatmul.mubr.f32.gmra.mrb[0].mxu0 %v2490
    %v2558 = vpop.f32.mrb[0].mxu0
    %v2559 = vadd.f32 %v2487, %v2558
    %v2560 = vpop.f32.mrb[0].mxu0
    %2561 = vdwg.mxu0
    %vm2562 = vcmask 41984
    %2563 = vst.msk [vmem:[#allocation4] sm:$0x3] %vm2562, %v2559
    // Predicated region
    $region54: #{cnn_forward.1} parent=1 // pred_check
      _
    $region55: #{cnn_forward.1} parent=1 // pred_check_branch
      %2565 = sbr.rel (0) target = $region57
    $region56: #{cnn_forward.1} parent=1 // pred_region
      %s2567 = ssub.s32 32, 32
      %2568 = vsyncadd [#allocation5], %s2567
      %s2570 = sshll.u32 [#allocation4], 4
      %s2571 = int_to_ptr.vmem [resolvable:$true] %s2570
      %2573 = dma.vmem_to_hbm [thread:$0]  %s2571, 32, %s13, [#allocation5]
    $region57: #{cnn_forward.1} parent=1 // pred_fallthru
      _
    // Predicated region
    $region58: #{cnn_forward.1} parent=1 // pred_check
      _
    $region59: #{cnn_forward.1} parent=1 // pred_check_branch
      %2575 = sbr.rel (0) target = $region61
    $region60: #{cnn_forward.1} parent=1 // pred_region
      %2576 = dma.done [#allocation5], 32
    $region61: #{cnn_forward.1} parent=1 // pred_fallthru
      _
    %2577 = vsyncpa [#allocation5], 1

</llo_original>
